<compile_context>
chip_gen: v5e
topology: v5e:2x2
jax: 0.10.0
libtpu: 0.0.40
codegen_flags: <defaults>
</compile_context>

<pallas_src>
import functools

import jax
import jax.numpy as jnp
from jax import lax
from jax.experimental import pallas as pl
from jax.experimental.pallas import tpu as pltpu


def _round_up(a, b):
    return ((a + b - 1) // b) * b


def deconv_bn_relu_kernel(w_ref, p_ref, affine_ref, o_ref, *, relu):
    # (Cout, Kp) x (tm, Kp) contracted on the shared K (last) axis -> (Cout, tm)
    # on the MXU with f32 accumulation.  Output tile last dim = tm >= 512 ->
    # lane-dense, unmasked stores.
    acc = lax.dot_general(
        w_ref[...], p_ref[...],
        dimension_numbers=(((1,), (1,)), ((), ())),
        preferred_element_type=jnp.float32)
    # Eval-mode BatchNorm affine in f32 on the accumulator (free on the VPU
    # slot; avoids double-rounding scale into the bf16 weights).
    y = acc * affine_ref[:, 0:1] + affine_ref[:, 1:2]
    if relu:
        y = jnp.maximum(y, 0.0)
    o_ref[...] = y.astype(o_ref.dtype)


def deconv3d_bn_relu(x, w, gamma, beta, running_mean, running_var,
                     *, stride=1, eps=1e-5, relu=True, bias=None, tm_max=4096):
    """ConvTranspose3d + eval-mode BN + ReLU.

    x: (N, Cin, D, H, W)  NCDHW (PyTorch)
    w: (Cin, Cout, kD, kH, kW)  PyTorch ConvTranspose3d weight layout
    Returns (N, Cout, Do, Ho, Wo) with Do = (D-1)*stride + kD, etc.
    """
    N, Cin, D, H, W = x.shape
    Cin_w, Cout, kd, kh, kw = w.shape
    assert Cin == Cin_w
    assert stride in (1, 2)

    Do = (D - 1) * stride + kd
    Ho = (H - 1) * stride + kh
    Wo = (W - 1) * stride + kw

    # ---- glue (plain JAX): transposed conv == VALID stride-1 conv over a
    #      zero-dilated, (k-1)-padded input with flipped/swapped weights ----
    x_ndhwc = jnp.transpose(x, (0, 2, 3, 4, 1))            # N, D, H, W, Cin
    if stride > 1:
        Dd = (D - 1) * stride + 1
        Hd = (H - 1) * stride + 1
        Wd = (W - 1) * stride + 1
        xd = jnp.zeros((N, Dd, Hd, Wd, Cin), x.dtype)
        xd = xd.at[:, ::stride, ::stride, ::stride, :].set(x_ndhwc)
    else:
        xd = x_ndhwc
    x_pad = jnp.pad(xd, ((0, 0), (kd - 1, kd - 1), (kh - 1, kh - 1),
                         (kw - 1, kw - 1), (0, 0)))
    x_pad = x_pad.astype(jnp.bfloat16)   # halve HBM traffic of the im2col matrix

    # im2col in its natural (M, K) layout: one concatenate of the taps along
    # the channel axis (K ordered (dz, dy, dx, ci)); K padding to a multiple of
    # 128 is folded in as extra zero channels; the reshape is a no-op view.
    K = kd * kh * kw * Cin
    Kp = _round_up(K, 128)
    M = N * Do * Ho * Wo
    taps = []
    for dz in range(kd):
        for dy in range(kh):
            for dx in range(kw):
                taps.append(x_pad[:, dz:dz + Do, dy:dy + Ho, dx:dx + Wo, :])
    if Kp > K:
        taps.append(jnp.zeros((N, Do, Ho, Wo, Kp - K), jnp.bfloat16))
    pM = jnp.concatenate(taps, axis=-1).reshape(M, Kp)      # (M, Kp)

    # ConvTranspose weight (Cin, Cout, kd, kh, kw): flip spatially, swap
    # channels, lay out (Cout, K) with K ordered (dz, dy, dx, ci) to match pM.
    wf = w[:, :, ::-1, ::-1, ::-1]
    wB = jnp.transpose(wf, (1, 2, 3, 4, 0)).reshape(Cout, K).astype(jnp.bfloat16)
    wB = jnp.pad(wB, ((0, 0), (0, Kp - K)))                 # (Cout, Kp)

    # Eval-mode BN as a per-row (scale, shift) pair, applied in f32 in-kernel.
    scale = (gamma / jnp.sqrt(running_var + eps)).astype(jnp.float32)
    shift = (beta - running_mean * scale).astype(jnp.float32)
    if bias is not None:
        shift = shift + bias.astype(jnp.float32) * scale
    affine = jnp.stack([scale, shift], axis=1)               # (Cout, 2)

    # M tiling: few, large steps (per-step fixed cost dominates small tiles),
    # and an even, balanced step count so v7x megacore splits the M axis.
    steps = max(1, pl.cdiv(M, tm_max))
    if steps > 1 and steps % 2:
        steps += 1
    tm = _round_up(pl.cdiv(M, steps), 512)
    Mp = steps * tm
    pM = jnp.pad(pM, ((0, Mp - M), (0, 0)))

    out2d = pl.pallas_call(
        functools.partial(deconv_bn_relu_kernel, relu=relu),
        out_shape=jax.ShapeDtypeStruct((Cout, Mp), x.dtype),
        grid_spec=pltpu.PrefetchScalarGridSpec(
            num_scalar_prefetch=0,
            grid=(steps,),
            in_specs=[
                pl.BlockSpec((Cout, Kp), lambda i: (0, 0)),   # weights (stay resident)
                pl.BlockSpec((tm, Kp), lambda i: (i, 0)),     # im2col row tile
                pl.BlockSpec((Cout, 2), lambda i: (0, 0)),    # BN (scale, shift)
            ],
            out_specs=pl.BlockSpec((Cout, tm), lambda i: (0, i)),
        ),
        compiler_params=pltpu.CompilerParams(
            dimension_semantics=("parallel",)),
    )(wB, pM, affine)

    out = out2d[:, :M].reshape(Cout, N, Do, Ho, Wo)
    return jnp.transpose(out, (1, 0, 2, 3, 4))               # back to NCDHW


def xavier_uniform_convtranspose3d_weight(key, in_ch, out_ch, k):
    # PyTorch xavier_uniform_ on a (Cin, Cout, k, k, k) ConvTranspose3d weight:
    # fan_in = Cout*k^3, fan_out = Cin*k^3.
    fan_in = out_ch * k * k * k
    fan_out = in_ch * k * k * k
    bound = (6.0 / (fan_in + fan_out)) ** 0.5
    return jax.random.uniform(key, (in_ch, out_ch, k, k, k),
                              dtype=jnp.float32, minval=-bound, maxval=bound)


if __name__ == "__main__":
    key = jax.random.PRNGKey(0)
    kx, kwt = jax.random.split(key)

    # Small shapes consistent with the module: batch=2, C_in=4, C_out=8,
    # spatial (D, H, W) = (8, 16, 16), kernel_size=3, stride in {1, 2}.
    N, Cin, Cout, D, H, W, ksz = 2, 4, 8, 8, 16, 16, 3

    x = jax.random.normal(kx, (N, Cin, D, H, W), dtype=jnp.float32)
    w = xavier_uniform_convtranspose3d_weight(kwt, Cin, Cout, ksz)

    # Freshly-initialized BatchNorm3d parameters / statistics (init_bn).
    gamma = jnp.ones((Cout,), jnp.float32)
    beta = jnp.zeros((Cout,), jnp.float32)
    running_mean = jnp.zeros((Cout,), jnp.float32)
    running_var = jnp.ones((Cout,), jnp.float32)

    eps = 1e-5
    scale = gamma / jnp.sqrt(running_var + eps)
    shift = beta - running_mean * scale

    for stride in (1, 2):
        y = deconv3d_bn_relu(x, w, gamma, beta, running_mean, running_var,
                             stride=stride, relu=True)
        y = jax.block_until_ready(y)

        Do = (D - 1) * stride + ksz
        Ho = (H - 1) * stride + ksz
        Wo = (W - 1) * stride + ksz
        assert y.shape == (N, Cout, Do, Ho, Wo)

        # Reference: lax transposed conv (lhs dilation + full padding + flipped,
        # channel-swapped kernel) on identically bf16-rounded inputs/weights,
        # f32 accumulation, then the same f32 BN affine + ReLU.
        wf_ref = jnp.transpose(w[:, :, ::-1, ::-1, ::-1],
                               (1, 0, 2, 3, 4)).astype(jnp.bfloat16)   # OIDHW
        ref = jax.lax.conv_general_dilated(
            x.astype(jnp.bfloat16), wf_ref,
            window_strides=(1, 1, 1),
            padding=[(ksz - 1, ksz - 1)] * 3,
            lhs_dilation=(stride, stride, stride),
            dimension_numbers=("NCDHW", "OIDHW", "NCDHW"),
            preferred_element_type=jnp.float32)
        ref = ref * scale[None, :, None, None, None] + shift[None, :, None, None, None]
        ref = jnp.maximum(ref, 0.0)
        assert jnp.allclose(y, ref, rtol=1e-3, atol=1e-3), (
            f"stride={stride}: max abs err {jnp.max(jnp.abs(y - ref))}")

    print("KERNEL_OK")
</pallas_src>

<mosaic_0001>
module attributes {stable_mosaic.version = 11 : i64} {
  func.func @deconv_bn_relu_kernel(%arg0: i32, %arg1: memref<8x128xbf16, #tpu.memory_space<vmem>>, %arg2: memref<3584x128xbf16, #tpu.memory_space<vmem>>, %arg3: memref<8x2xf32, #tpu.memory_space<vmem>>, %arg4: memref<8x3584xf32, #tpu.memory_space<vmem>>) attributes {dimension_semantics = [#tpu.dimension_semantics<parallel>], iteration_bounds = array<i64: 2>, scalar_prefetch = 0 : i64, scratch_operands = 0 : i64, tpu.core_type = #tpu.core_type<tc>, window_params = [{pipeline_mode = #tpu.pipeline_mode<synchronous>, transform_indices = @transform_0, window_bounds = array<i64: 8, 128>}, {transform_indices = @transform_1, window_bounds = array<i64: 3584, 128>}, {pipeline_mode = #tpu.pipeline_mode<synchronous>, transform_indices = @transform_2, window_bounds = array<i64: 8, 2>}, {transform_indices = @transform_3, window_bounds = array<i64: 8, 3584>}]} {
    %c0 = arith.constant 0 : index
    %c0_0 = arith.constant 0 : index
    %0 = vector.load %arg1[%c0, %c0_0] : memref<8x128xbf16, #tpu.memory_space<vmem>>, vector<8x128xbf16>
    %c0_1 = arith.constant 0 : index
    %c0_2 = arith.constant 0 : index
    %1 = vector.load %arg2[%c0_1, %c0_2] : memref<3584x128xbf16, #tpu.memory_space<vmem>>, vector<3584x128xbf16>
    %cst = arith.constant dense<0.000000e+00> : vector<8x3584xf32>
    %2 = tpu.matmul %0, %1, %cst {dimension_numbers = #tpu.dot_dimension_numbers<[1], [1], [0], [0], [0, 0, 1, 0], [], []>} : vector<8x128xbf16>, vector<3584x128xbf16>, vector<8x3584xf32> -> vector<8x3584xf32>
    %c0_3 = arith.constant 0 : index
    %c0_4 = arith.constant 0 : index
    %3 = vector.load %arg3[%c0_3, %c0_4] : memref<8x2xf32, #tpu.memory_space<vmem>>, vector<8x1xf32>
    %4 = vector.broadcast %3 : vector<8x1xf32> to vector<8x3584xf32>
    %5 = arith.mulf %2, %4 : vector<8x3584xf32>
    %c0_5 = arith.constant 0 : index
    %c1 = arith.constant 1 : index
    %6 = vector.load %arg3[%c0_5, %c1] : memref<8x2xf32, #tpu.memory_space<vmem>>, vector<8x1xf32>
    %7 = vector.broadcast %6 : vector<8x1xf32> to vector<8x3584xf32>
    %8 = arith.addf %5, %7 : vector<8x3584xf32>
    %cst_6 = arith.constant 0.000000e+00 : f32
    %9 = vector.broadcast %cst_6 : f32 to vector<8x3584xf32>
    %10 = arith.maximumf %8, %9 : vector<8x3584xf32>
    %c0_7 = arith.constant 0 : index
    %c0_8 = arith.constant 0 : index
    %11 = vector.load %arg4[%c0_7, %c0_8] : memref<8x3584xf32, #tpu.memory_space<vmem>>, vector<8x3584xf32>
    tpu.vector_store %arg4[%c0_7, %c0_8], %10 {strides = array<i32>} : memref<8x3584xf32, #tpu.memory_space<vmem>>, vector<8x3584xf32>,
    return
  }
  func.func @transform_0(%arg0: i32) -> (i32, i32) {
    %c0_i32 = arith.constant 0 : i32
    %c0_i32_0 = arith.constant 0 : i32
    %c0_i32_1 = arith.constant 0 : i32
    return %c0_i32, %c0_i32_0 : i32, i32
  }
  func.func @transform_1(%arg0: i32) -> (i32, i32) {
    %c0_i32 = arith.constant 0 : i32
    %c0_i32_0 = arith.constant 0 : i32
    return %arg0, %c0_i32 : i32, i32
  }
  func.func @transform_2(%arg0: i32) -> (i32, i32) {
    %c0_i32 = arith.constant 0 : i32
    %c0_i32_0 = arith.constant 0 : i32
    %c0_i32_1 = arith.constant 0 : i32
    return %c0_i32, %c0_i32_0 : i32, i32
  }
  func.func @transform_3(%arg0: i32) -> (i32, i32) {
    %c0_i32 = arith.constant 0 : i32
    %c0_i32_0 = arith.constant 0 : i32
    return %c0_i32, %arg0 : i32, i32
  }
}

</mosaic_0001>

<llo_original>
// kernel: tpu_custom_call.1
$region0: #{tpu_custom_call.1}
  #allocation0 [shape = 'u32[]', space=smem, size = 0x4, offset = 0x4, fixed_abs, tag = 'smem constant byte address 0x4 - core index']
  #allocation1 [shape = 'u32[72,128]{1,0:T(1,128)}', space=vmem, size = 0x9000, scoped, tag = 'internal scratch']
  %s0 = inlined_call_operand.hbm [shape: bf16[8,128], index: 0, kind: input, shape index: {}]
  %s1 = inlined_call_operand.hbm [shape: bf16[7168,128], index: 1, kind: input, shape index: {}]
  %s2 = inlined_call_operand.vmem [shape: f32[8,2], index: 2, kind: input, shape index: {}]
  %s3 = inlined_call_operand.hbm [shape: f32[8,7168], index: 3, kind: output, shape index: {}]
  %s4 = sld [smem:[#allocation0]]
  $region53: #{tpu_custom_call.1} parent=0
    _
  %s6 = ssub.s32 1, %s4
  %s7 = scalar_select 0, %s6, %s4
  $region1: #{tpu_custom_call.1} parent=0
    #allocation2 [shape = 'u8[2048]{0}', space=vmem, size = 0x800, scoped, tag = 'input window, operand 0, single buffered']
    #allocation3 [shape = 's32[2]{0}', space=sflag, size = 0x8, scoped, tag = 'scoped memory for tpu_custom_call.1']
    #allocation4 [shape = 's32[2]{0}', space=sflag, size = 0x8, scoped, tag = 'scoped memory for tpu_custom_call.1']
    #allocation5 [shape = 'u8[1835008]{0}', space=vmem, size = 0x1c0000, scoped, tag = 'input window, operand 1']
    #allocation6 [shape = 's32[2]{0}', space=sflag, size = 0x8, scoped, tag = 'scoped memory for tpu_custom_call.1']
    #allocation7 [shape = 'u8[229376]{0}', space=vmem, size = 0x38000, scoped, tag = 'output window, operand 0']
    %8 = vsyncpa [#allocation3], 0
    %9 = vsyncpa [#allocation6], 0
    %s10 = scalar_lea.sflag [#allocation6], 1
    %11 = vsyncpa %s10, 0
    %12 = vsyncpa [#allocation4], 0
    %s13 = scalar_lea.sflag [#allocation4], 1
    %14 = vsyncpa %s13, 0
    loop: start=0, step=1, limit=4
    $region2: #{tpu_custom_call.1} parent=1 // loop_pre_header
      _
    $region3: #{tpu_custom_call.1} parent=1 // loop_header
      %s16 = sphi 0, %s20
      %p17 = scmp.ge.s32.totalorder %s16, 4
      %s24 = sphi 0, %s24
      %s26 = sphi 0, %s24
      %s27 = sphi 0, %s26
      %s41 = sphi 0, %s27
      %s47 = sphi 0, %s49
      %s50 = sphi 0, %s47
      %s51 = sphi 0, %s50
      %s67 = sphi 0, %s51
      %s71 = sphi 0, %s71
      %s73 = sphi 0, %s71
      %s74 = sphi 0, %s73
      %s88 = sphi 0, %s74
      %s94 = sphi 0, %s96
      %s97 = sphi 0, %s94
      %s98 = sphi 0, %s97
      %s114 = sphi 0, %s98
    $region4: #{tpu_custom_call.1} parent=1 // loop_header_branch
      %19 = sbr.rel (%p17) target = $region8
    $region5: #{tpu_custom_call.1} parent=1 // loop_body
      %s21 = ssub.s32 %s16, 1
      %s22 = ssub.s32 %s16, 2
      %s23 = sadd.s32 %s16, 1
      %s25 = sadd.s32 %s24, 1
      %p28 = scmp.eq.s32.totalorder %s16, 1
      %p29 = scmp.ne.s32.totalorder %s24, %s26
      %p30 = scmp.eq.s32.totalorder %s16, 0
      %p31 = por %p29, %p30
      %p32 = scmp.ne.s32.totalorder %s24, %s26
      %p33 = scmp.eq.s32.totalorder %s21, 1
      %p34 = por %p32, %p33
      %p35 = scmp.ne.s32.totalorder %s26, %s27
      %p36 = scmp.eq.s32.totalorder %s21, 0
      %p37 = por %p35, %p36
      %p38 = scmp.ne.s32.totalorder %s26, %s27
      %p39 = scmp.eq.s32.totalorder %s22, 1
      %p40 = por %p38, %p39
      %p42 = scmp.ne.s32.totalorder %s27, %s41
      %p43 = scmp.eq.s32.totalorder %s22, 0
      %p44 = por %p42, %p43
      %s45 = ssub.s32 %s16, %s23
      %p46 = scmp.eq.s32.totalorder %s45, 0
      %s48 = sadd.s32 %s47, 1
      %s49 = scalar_select %p46, %s47, %s48
      %p52 = pneg %p46
      %p53 = scmp.eq.s32.totalorder %s16, 1
      %p54 = por %p52, %p53
      %p55 = scmp.ne.s32.totalorder %s47, %s50
      %p56 = scmp.eq.s32.totalorder %s16, 0
      %p57 = por %p55, %p56
      %p58 = scmp.ne.s32.totalorder %s47, %s50
      %p59 = scmp.eq.s32.totalorder %s21, 1
      %p60 = por %p58, %p59
      %p61 = scmp.ne.s32.totalorder %s50, %s51
      %p62 = scmp.eq.s32.totalorder %s21, 0
      %p63 = por %p61, %p62
      %p64 = scmp.ne.s32.totalorder %s50, %s51
      %p65 = scmp.eq.s32.totalorder %s22, 1
      %p66 = por %p64, %p65
      %p68 = scmp.ne.s32.totalorder %s51, %s67
      %p69 = scmp.eq.s32.totalorder %s22, 0
      %p70 = por %p68, %p69
      %s72 = sadd.s32 %s71, 1
      %p75 = scmp.eq.s32.totalorder %s16, 1
      %p76 = scmp.ne.s32.totalorder %s71, %s73
      %p77 = scmp.eq.s32.totalorder %s16, 0
      %p78 = por %p76, %p77
      %p79 = scmp.ne.s32.totalorder %s71, %s73
      %p80 = scmp.eq.s32.totalorder %s21, 1
      %p81 = por %p79, %p80
      %p82 = scmp.ne.s32.totalorder %s73, %s74
      %p83 = scmp.eq.s32.totalorder %s21, 0
      %p84 = por %p82, %p83
      %p85 = scmp.ne.s32.totalorder %s73, %s74
      %p86 = scmp.eq.s32.totalorder %s22, 1
      %p87 = por %p85, %p86
      %p89 = scmp.ne.s32.totalorder %s74, %s88
      %p90 = scmp.eq.s32.totalorder %s22, 0
      %p91 = por %p89, %p90
      %s92 = ssub.s32 %s16, %s23
      %p93 = scmp.eq.s32.totalorder %s92, 0
      %s95 = sadd.s32 %s94, 1
      %s96 = scalar_select %p93, %s94, %s95
      %p99 = pneg %p93
      %p100 = scmp.eq.s32.totalorder %s16, 1
      %p101 = por %p99, %p100
      %p102 = scmp.ne.s32.totalorder %s94, %s97
      %p103 = scmp.eq.s32.totalorder %s16, 0
      %p104 = por %p102, %p103
      %p105 = scmp.ne.s32.totalorder %s94, %s97
      %p106 = scmp.eq.s32.totalorder %s21, 1
      %p107 = por %p105, %p106
      %p108 = scmp.ne.s32.totalorder %s97, %s98
      %p109 = scmp.eq.s32.totalorder %s21, 0
      %p110 = por %p108, %p109
      %p111 = scmp.ne.s32.totalorder %s97, %s98
      %p112 = scmp.eq.s32.totalorder %s22, 1
      %p113 = por %p111, %p112
      %p115 = scmp.ne.s32.totalorder %s98, %s114
      %p116 = scmp.eq.s32.totalorder %s22, 0
      %p117 = por %p115, %p116
      %p118 = scmp.le.s32.totalorder 1, %s16
      %p119 = scmp.lt.s32.totalorder %s16, 3
      %p120 = pnand %p118, %p119
      %p121 = pneg %p120
      // Predicated region
      $region9: #{tpu_custom_call.1} parent=5 // pred_check
        _
      $region10: #{tpu_custom_call.1} parent=5 // pred_check_branch
        %123 = sbr.rel (%p120) target = $region12
      $region11: #{tpu_custom_call.1} parent=5 // pred_region
        %s124 = ssub.s32 %s16, 1
        // Predicated region
        $region13: #{tpu_custom_call.1} parent=11 // pred_check
          %p125 = pneg %p37
        $region14: #{tpu_custom_call.1} parent=11 // pred_check_branch
          %127 = sbr.rel (%p125) target = $region16
        $region15: #{tpu_custom_call.1} parent=11 // pred_region
          %129 = vsyncadd [#allocation3], 0
          %s131 = sshll.u32 %s0, 4
          %s132 = int_to_ptr.hbm [resolvable:$true] %s131
          %s133 = sshll.u32 [#allocation2], 4
          %s134 = int_to_ptr.vmem [resolvable:$true] %s133
          %136 = dma.hbm_to_vmem [thread:$0]  %s132, 64, %s134, [#allocation3]
        $region16: #{tpu_custom_call.1} parent=11 // pred_fallthru
          _
        // Predicated region
        $region17: #{tpu_custom_call.1} parent=11 // pred_check
          %p137 = pneg %p84
        $region18: #{tpu_custom_call.1} parent=11 // pred_check_branch
          %139 = sbr.rel (%p137) target = $region20
        $region19: #{tpu_custom_call.1} parent=11 // pred_region
          _
        $region20: #{tpu_custom_call.1} parent=11 // pred_fallthru
          _
      $region12: #{tpu_custom_call.1} parent=5 // pred_fallthru
        _
      %p140 = scmp.lt.s32.totalorder %s16, 2
      // Predicated region
      $region21: #{tpu_custom_call.1} parent=5 // pred_check
        %p141 = pneg %p140
      $region22: #{tpu_custom_call.1} parent=5 // pred_check_branch
        %143 = sbr.rel (%p141) target = $region24
      $region23: #{tpu_custom_call.1} parent=5 // pred_region
        // Predicated region
        $region25: #{tpu_custom_call.1} parent=23 // pred_check
          %p144 = pneg %p57
        $region26: #{tpu_custom_call.1} parent=23 // pred_check_branch
          %146 = sbr.rel (%p144) target = $region28
        $region27: #{tpu_custom_call.1} parent=23 // pred_region
          %s147 = sand.u32 %s47, 1
          %s148 = scalar_lea.sflag [#allocation6], %s147
          %s149 = sand.u32 %s47, 1
          %s150 = smul.addr %s149, 1792
          %s151 = scalar_lea.vmem [#allocation5], %s150
          %s152 = smul.u32 448, %s16
          %154 = vsyncadd %s148, 0
          %s155 = smul.addr %s152, 4
          %s156 = scalar_lea.hbm %s1, %s155
          %s157 = sshll.u32 %s156, 4
          %s158 = int_to_ptr.hbm [resolvable:$true] %s157
          %s159 = sshll.u32 %s151, 4
          %s160 = int_to_ptr.vmem [resolvable:$true] %s159
          %165 = dma.hbm_to_vmem [thread:$0]  %s158, 28672, %s160, %s148, 64, 64, 4
        $region28: #{tpu_custom_call.1} parent=23 // pred_fallthru
          _
      $region24: #{tpu_custom_call.1} parent=5 // pred_fallthru
        _
      %p166 = scmp.le.s32.totalorder 1, %s16
      %p167 = scmp.lt.s32.totalorder %s16, 3
      %p168 = pnand %p166, %p167
      %p169 = pneg %p168
      // Predicated region
      $region29: #{tpu_custom_call.1} parent=5 // pred_check
        _
      $region30: #{tpu_custom_call.1} parent=5 // pred_check_branch
        %171 = sbr.rel (%p168) target = $region32
      $region31: #{tpu_custom_call.1} parent=5 // pred_region
        %s172 = ssub.s32 %s16, 1
        // Predicated region
        $region33: #{tpu_custom_call.1} parent=31 // pred_check
          %p173 = pneg %p37
        $region34: #{tpu_custom_call.1} parent=31 // pred_check_branch
          %175 = sbr.rel (%p173) target = $region36
        $region35: #{tpu_custom_call.1} parent=31 // pred_region
          %177 = dma.done [#allocation3], 64
        $region36: #{tpu_custom_call.1} parent=31 // pred_fallthru
          _
        %s178 = sand.u32 %s50, 1
        %s179 = scalar_lea.sflag [#allocation6], %s178
        %s180 = sand.u32 %s50, 1
        %s181 = smul.addr %s180, 1792
        %s182 = scalar_lea.vmem [#allocation5], %s181
        // Predicated region
        $region37: #{tpu_custom_call.1} parent=31 // pred_check
          %p183 = pneg %p63
        $region38: #{tpu_custom_call.1} parent=31 // pred_check_branch
          %185 = sbr.rel (%p183) target = $region40
        $region39: #{tpu_custom_call.1} parent=31 // pred_region
          %187 = dma.done %s179, 28672
        $region40: #{tpu_custom_call.1} parent=31 // pred_fallthru
          _
        %p188 = pneg %p37
        %p189 = pneg %p34
        %s190 = sand.u32 %s50, 1
        %s191 = scalar_lea.sflag [#allocation6], %s190
        %s192 = sand.u32 %s50, 1
        %s193 = smul.addr %s192, 1792
        %s194 = scalar_lea.vmem [#allocation5], %s193
        %p195 = pneg %p63
        %p196 = pneg %p60
        %p197 = pneg %p84
        %p198 = pneg %p81
        %p199 = pneg %p110
        %p200 = pneg %p107
        %s201 = sand.u32 %s97, 1
        %s202 = scalar_lea.sflag [#allocation4], %s201
        %s203 = sand.u32 %s97, 1
        %s204 = smul.addr %s203, 224
        %s205 = scalar_lea.vmem [#allocation7], %s204
        %s206 = smul.u32 448, %s21
        %s207 = smul.u32 28, %s21
        %v208 = vld [vmem:[#allocation2] sm:$0xf]
        %v209 = vld [vmem:[%s182] sm:$0xf]
        %v210 = vld [vmem:[%s182 + $0x4] sm:$0xf]
        %v211 = vld [vmem:[%s182 + $0x8] sm:$0xf]
        %v212 = vld [vmem:[%s182 + $0xc] sm:$0xf]
        %v213 = vld [vmem:[%s182 + $0x10] sm:$0xf]
        %v214 = vld [vmem:[%s182 + $0x14] sm:$0xf]
        %v215 = vld [vmem:[%s182 + $0x18] sm:$0xf]
        %v216 = vld [vmem:[%s182 + $0x1c] sm:$0xf]
        %v217 = vld [vmem:[%s182 + $0x20] sm:$0xf]
        %v218 = vld [vmem:[%s182 + $0x24] sm:$0xf]
        %v219 = vld [vmem:[%s182 + $0x28] sm:$0xf]
        %v220 = vld [vmem:[%s182 + $0x2c] sm:$0xf]
        %v221 = vld [vmem:[%s182 + $0x30] sm:$0xf]
        %v222 = vld [vmem:[%s182 + $0x34] sm:$0xf]
        %v223 = vld [vmem:[%s182 + $0x38] sm:$0xf]
        %v224 = vld [vmem:[%s182 + $0x3c] sm:$0xf]
        %v225 = vld [vmem:[%s182 + $0x40] sm:$0xf]
        %v226 = vld [vmem:[%s182 + $0x44] sm:$0xf]
        %v227 = vld [vmem:[%s182 + $0x48] sm:$0xf]
        %v228 = vld [vmem:[%s182 + $0x4c] sm:$0xf]
        %v229 = vld [vmem:[%s182 + $0x50] sm:$0xf]
        %v230 = vld [vmem:[%s182 + $0x54] sm:$0xf]
        %v231 = vld [vmem:[%s182 + $0x58] sm:$0xf]
        %v232 = vld [vmem:[%s182 + $0x5c] sm:$0xf]
        %v233 = vld [vmem:[%s182 + $0x60] sm:$0xf]
        %v234 = vld [vmem:[%s182 + $0x64] sm:$0xf]
        %v235 = vld [vmem:[%s182 + $0x68] sm:$0xf]
        %v236 = vld [vmem:[%s182 + $0x6c] sm:$0xf]
        %v237 = vld [vmem:[%s182 + $0x70] sm:$0xf]
        %v238 = vld [vmem:[%s182 + $0x74] sm:$0xf]
        %v239 = vld [vmem:[%s182 + $0x78] sm:$0xf]
        %v240 = vld [vmem:[%s182 + $0x7c] sm:$0xf]
        %v241 = vld [vmem:[%s182 + $0x80] sm:$0xf]
        %v242 = vld [vmem:[%s182 + $0x84] sm:$0xf]
        %v243 = vld [vmem:[%s182 + $0x88] sm:$0xf]
        %v244 = vld [vmem:[%s182 + $0x8c] sm:$0xf]
        %v245 = vld [vmem:[%s182 + $0x90] sm:$0xf]
        %v246 = vld [vmem:[%s182 + $0x94] sm:$0xf]
        %v247 = vld [vmem:[%s182 + $0x98] sm:$0xf]
        %v248 = vld [vmem:[%s182 + $0x9c] sm:$0xf]
        %v249 = vld [vmem:[%s182 + $0xa0] sm:$0xf]
        %v250 = vld [vmem:[%s182 + $0xa4] sm:$0xf]
        %v251 = vld [vmem:[%s182 + $0xa8] sm:$0xf]
        %v252 = vld [vmem:[%s182 + $0xac] sm:$0xf]
        %v253 = vld [vmem:[%s182 + $0xb0] sm:$0xf]
        %v254 = vld [vmem:[%s182 + $0xb4] sm:$0xf]
        %v255 = vld [vmem:[%s182 + $0xb8] sm:$0xf]
        %v256 = vld [vmem:[%s182 + $0xbc] sm:$0xf]
        %v257 = vld [vmem:[%s182 + $0xc0] sm:$0xf]
        %v258 = vld [vmem:[%s182 + $0xc4] sm:$0xf]
        %v259 = vld [vmem:[%s182 + $0xc8] sm:$0xf]
        %v260 = vld [vmem:[%s182 + $0xcc] sm:$0xf]
        %v261 = vld [vmem:[%s182 + $0xd0] sm:$0xf]
        %v262 = vld [vmem:[%s182 + $0xd4] sm:$0xf]
        %v263 = vld [vmem:[%s182 + $0xd8] sm:$0xf]
        %v264 = vld [vmem:[%s182 + $0xdc] sm:$0xf]
        %v265 = vld [vmem:[%s182 + $0xe0] sm:$0xf]
        %v266 = vld [vmem:[%s182 + $0xe4] sm:$0xf]
        %v267 = vld [vmem:[%s182 + $0xe8] sm:$0xf]
        %v268 = vld [vmem:[%s182 + $0xec] sm:$0xf]
        %v269 = vld [vmem:[%s182 + $0xf0] sm:$0xf]
        %v270 = vld [vmem:[%s182 + $0xf4] sm:$0xf]
        %v271 = vld [vmem:[%s182 + $0xf8] sm:$0xf]
        %v272 = vld [vmem:[%s182 + $0xfc] sm:$0xf]
        %v273 = vld [vmem:[%s182 + $0x100] sm:$0xf]
        %v274 = vld [vmem:[%s182 + $0x104] sm:$0xf]
        %v275 = vld [vmem:[%s182 + $0x108] sm:$0xf]
        %v276 = vld [vmem:[%s182 + $0x10c] sm:$0xf]
        %v277 = vld [vmem:[%s182 + $0x110] sm:$0xf]
        %v278 = vld [vmem:[%s182 + $0x114] sm:$0xf]
        %v279 = vld [vmem:[%s182 + $0x118] sm:$0xf]
        %v280 = vld [vmem:[%s182 + $0x11c] sm:$0xf]
        %v281 = vld [vmem:[%s182 + $0x120] sm:$0xf]
        %v282 = vld [vmem:[%s182 + $0x124] sm:$0xf]
        %v283 = vld [vmem:[%s182 + $0x128] sm:$0xf]
        %v284 = vld [vmem:[%s182 + $0x12c] sm:$0xf]
        %v285 = vld [vmem:[%s182 + $0x130] sm:$0xf]
        %v286 = vld [vmem:[%s182 + $0x134] sm:$0xf]
        %v287 = vld [vmem:[%s182 + $0x138] sm:$0xf]
        %v288 = vld [vmem:[%s182 + $0x13c] sm:$0xf]
        %v289 = vld [vmem:[%s182 + $0x140] sm:$0xf]
        %v290 = vld [vmem:[%s182 + $0x144] sm:$0xf]
        %v291 = vld [vmem:[%s182 + $0x148] sm:$0xf]
        %v292 = vld [vmem:[%s182 + $0x14c] sm:$0xf]
        %v293 = vld [vmem:[%s182 + $0x150] sm:$0xf]
        %v294 = vld [vmem:[%s182 + $0x154] sm:$0xf]
        %v295 = vld [vmem:[%s182 + $0x158] sm:$0xf]
        %v296 = vld [vmem:[%s182 + $0x15c] sm:$0xf]
        %v297 = vld [vmem:[%s182 + $0x160] sm:$0xf]
        %v298 = vld [vmem:[%s182 + $0x164] sm:$0xf]
        %v299 = vld [vmem:[%s182 + $0x168] sm:$0xf]
        %v300 = vld [vmem:[%s182 + $0x16c] sm:$0xf]
        %v301 = vld [vmem:[%s182 + $0x170] sm:$0xf]
        %v302 = vld [vmem:[%s182 + $0x174] sm:$0xf]
        %v303 = vld [vmem:[%s182 + $0x178] sm:$0xf]
        %v304 = vld [vmem:[%s182 + $0x17c] sm:$0xf]
        %v305 = vld [vmem:[%s182 + $0x180] sm:$0xf]
        %v306 = vld [vmem:[%s182 + $0x184] sm:$0xf]
        %v307 = vld [vmem:[%s182 + $0x188] sm:$0xf]
        %v308 = vld [vmem:[%s182 + $0x18c] sm:$0xf]
        %v309 = vld [vmem:[%s182 + $0x190] sm:$0xf]
        %v310 = vld [vmem:[%s182 + $0x194] sm:$0xf]
        %v311 = vld [vmem:[%s182 + $0x198] sm:$0xf]
        %v312 = vld [vmem:[%s182 + $0x19c] sm:$0xf]
        %v313 = vld [vmem:[%s182 + $0x1a0] sm:$0xf]
        %v314 = vld [vmem:[%s182 + $0x1a4] sm:$0xf]
        %v315 = vld [vmem:[%s182 + $0x1a8] sm:$0xf]
        %v316 = vld [vmem:[%s182 + $0x1ac] sm:$0xf]
        %v317 = vld [vmem:[%s182 + $0x1b0] sm:$0xf]
        %v318 = vld [vmem:[%s182 + $0x1b4] sm:$0xf]
        %v319 = vld [vmem:[%s182 + $0x1b8] sm:$0xf]
        %v320 = vld [vmem:[%s182 + $0x1bc] sm:$0xf]
        %v321 = vld [vmem:[%s182 + $0x1c0] sm:$0xf]
        %v322 = vld [vmem:[%s182 + $0x1c4] sm:$0xf]
        %v323 = vld [vmem:[%s182 + $0x1c8] sm:$0xf]
        %v324 = vld [vmem:[%s182 + $0x1cc] sm:$0xf]
        %v325 = vld [vmem:[%s182 + $0x1d0] sm:$0xf]
        %v326 = vld [vmem:[%s182 + $0x1d4] sm:$0xf]
        %v327 = vld [vmem:[%s182 + $0x1d8] sm:$0xf]
        %v328 = vld [vmem:[%s182 + $0x1dc] sm:$0xf]
        %v329 = vld [vmem:[%s182 + $0x1e0] sm:$0xf]
        %v330 = vld [vmem:[%s182 + $0x1e4] sm:$0xf]
        %v331 = vld [vmem:[%s182 + $0x1e8] sm:$0xf]
        %v332 = vld [vmem:[%s182 + $0x1ec] sm:$0xf]
        %v333 = vld [vmem:[%s182 + $0x1f0] sm:$0xf]
        %v334 = vld [vmem:[%s182 + $0x1f4] sm:$0xf]
        %v335 = vld [vmem:[%s182 + $0x1f8] sm:$0xf]
        %v336 = vld [vmem:[%s182 + $0x1fc] sm:$0xf]
        %v337 = vld [vmem:[%s182 + $0x200] sm:$0xf]
        %v338 = vld [vmem:[%s182 + $0x204] sm:$0xf]
        %v339 = vld [vmem:[%s182 + $0x208] sm:$0xf]
        %v340 = vld [vmem:[%s182 + $0x20c] sm:$0xf]
        %v341 = vld [vmem:[%s182 + $0x210] sm:$0xf]
        %v342 = vld [vmem:[%s182 + $0x214] sm:$0xf]
        %v343 = vld [vmem:[%s182 + $0x218] sm:$0xf]
        %v344 = vld [vmem:[%s182 + $0x21c] sm:$0xf]
        %v345 = vld [vmem:[%s182 + $0x220] sm:$0xf]
        %v346 = vld [vmem:[%s182 + $0x224] sm:$0xf]
        %v347 = vld [vmem:[%s182 + $0x228] sm:$0xf]
        %v348 = vld [vmem:[%s182 + $0x22c] sm:$0xf]
        %v349 = vld [vmem:[%s182 + $0x230] sm:$0xf]
        %v350 = vld [vmem:[%s182 + $0x234] sm:$0xf]
        %v351 = vld [vmem:[%s182 + $0x238] sm:$0xf]
        %v352 = vld [vmem:[%s182 + $0x23c] sm:$0xf]
        %v353 = vld [vmem:[%s182 + $0x240] sm:$0xf]
        %v354 = vld [vmem:[%s182 + $0x244] sm:$0xf]
        %v355 = vld [vmem:[%s182 + $0x248] sm:$0xf]
        %v356 = vld [vmem:[%s182 + $0x24c] sm:$0xf]
        %v357 = vld [vmem:[%s182 + $0x250] sm:$0xf]
        %v358 = vld [vmem:[%s182 + $0x254] sm:$0xf]
        %v359 = vld [vmem:[%s182 + $0x258] sm:$0xf]
        %v360 = vld [vmem:[%s182 + $0x25c] sm:$0xf]
        %v361 = vld [vmem:[%s182 + $0x260] sm:$0xf]
        %v362 = vld [vmem:[%s182 + $0x264] sm:$0xf]
        %v363 = vld [vmem:[%s182 + $0x268] sm:$0xf]
        %v364 = vld [vmem:[%s182 + $0x26c] sm:$0xf]
        %v365 = vld [vmem:[%s182 + $0x270] sm:$0xf]
        %v366 = vld [vmem:[%s182 + $0x274] sm:$0xf]
        %v367 = vld [vmem:[%s182 + $0x278] sm:$0xf]
        %v368 = vld [vmem:[%s182 + $0x27c] sm:$0xf]
        %v369 = vld [vmem:[%s182 + $0x280] sm:$0xf]
        %v370 = vld [vmem:[%s182 + $0x284] sm:$0xf]
        %v371 = vld [vmem:[%s182 + $0x288] sm:$0xf]
        %v372 = vld [vmem:[%s182 + $0x28c] sm:$0xf]
        %v373 = vld [vmem:[%s182 + $0x290] sm:$0xf]
        %v374 = vld [vmem:[%s182 + $0x294] sm:$0xf]
        %v375 = vld [vmem:[%s182 + $0x298] sm:$0xf]
        %v376 = vld [vmem:[%s182 + $0x29c] sm:$0xf]
        %v377 = vld [vmem:[%s182 + $0x2a0] sm:$0xf]
        %v378 = vld [vmem:[%s182 + $0x2a4] sm:$0xf]
        %v379 = vld [vmem:[%s182 + $0x2a8] sm:$0xf]
        %v380 = vld [vmem:[%s182 + $0x2ac] sm:$0xf]
        %v381 = vld [vmem:[%s182 + $0x2b0] sm:$0xf]
        %v382 = vld [vmem:[%s182 + $0x2b4] sm:$0xf]
        %v383 = vld [vmem:[%s182 + $0x2b8] sm:$0xf]
        %v384 = vld [vmem:[%s182 + $0x2bc] sm:$0xf]
        %v385 = vld [vmem:[%s182 + $0x2c0] sm:$0xf]
        %v386 = vld [vmem:[%s182 + $0x2c4] sm:$0xf]
        %v387 = vld [vmem:[%s182 + $0x2c8] sm:$0xf]
        %v388 = vld [vmem:[%s182 + $0x2cc] sm:$0xf]
        %v389 = vld [vmem:[%s182 + $0x2d0] sm:$0xf]
        %v390 = vld [vmem:[%s182 + $0x2d4] sm:$0xf]
        %v391 = vld [vmem:[%s182 + $0x2d8] sm:$0xf]
        %v392 = vld [vmem:[%s182 + $0x2dc] sm:$0xf]
        %v393 = vld [vmem:[%s182 + $0x2e0] sm:$0xf]
        %v394 = vld [vmem:[%s182 + $0x2e4] sm:$0xf]
        %v395 = vld [vmem:[%s182 + $0x2e8] sm:$0xf]
        %v396 = vld [vmem:[%s182 + $0x2ec] sm:$0xf]
        %v397 = vld [vmem:[%s182 + $0x2f0] sm:$0xf]
        %v398 = vld [vmem:[%s182 + $0x2f4] sm:$0xf]
        %v399 = vld [vmem:[%s182 + $0x2f8] sm:$0xf]
        %v400 = vld [vmem:[%s182 + $0x2fc] sm:$0xf]
        %v401 = vld [vmem:[%s182 + $0x300] sm:$0xf]
        %v402 = vld [vmem:[%s182 + $0x304] sm:$0xf]
        %v403 = vld [vmem:[%s182 + $0x308] sm:$0xf]
        %v404 = vld [vmem:[%s182 + $0x30c] sm:$0xf]
        %v405 = vld [vmem:[%s182 + $0x310] sm:$0xf]
        %v406 = vld [vmem:[%s182 + $0x314] sm:$0xf]
        %v407 = vld [vmem:[%s182 + $0x318] sm:$0xf]
        %v408 = vld [vmem:[%s182 + $0x31c] sm:$0xf]
        %v409 = vld [vmem:[%s182 + $0x320] sm:$0xf]
        %v410 = vld [vmem:[%s182 + $0x324] sm:$0xf]
        %v411 = vld [vmem:[%s182 + $0x328] sm:$0xf]
        %v412 = vld [vmem:[%s182 + $0x32c] sm:$0xf]
        %v413 = vld [vmem:[%s182 + $0x330] sm:$0xf]
        %v414 = vld [vmem:[%s182 + $0x334] sm:$0xf]
        %v415 = vld [vmem:[%s182 + $0x338] sm:$0xf]
        %v416 = vld [vmem:[%s182 + $0x33c] sm:$0xf]
        %v417 = vld [vmem:[%s182 + $0x340] sm:$0xf]
        %v418 = vld [vmem:[%s182 + $0x344] sm:$0xf]
        %v419 = vld [vmem:[%s182 + $0x348] sm:$0xf]
        %v420 = vld [vmem:[%s182 + $0x34c] sm:$0xf]
        %v421 = vld [vmem:[%s182 + $0x350] sm:$0xf]
        %v422 = vld [vmem:[%s182 + $0x354] sm:$0xf]
        %v423 = vld [vmem:[%s182 + $0x358] sm:$0xf]
        %v424 = vld [vmem:[%s182 + $0x35c] sm:$0xf]
        %v425 = vld [vmem:[%s182 + $0x360] sm:$0xf]
        %v426 = vld [vmem:[%s182 + $0x364] sm:$0xf]
        %v427 = vld [vmem:[%s182 + $0x368] sm:$0xf]
        %v428 = vld [vmem:[%s182 + $0x36c] sm:$0xf]
        %v429 = vld [vmem:[%s182 + $0x370] sm:$0xf]
        %v430 = vld [vmem:[%s182 + $0x374] sm:$0xf]
        %v431 = vld [vmem:[%s182 + $0x378] sm:$0xf]
        %v432 = vld [vmem:[%s182 + $0x37c] sm:$0xf]
        %v433 = vld [vmem:[%s182 + $0x380] sm:$0xf]
        %v434 = vld [vmem:[%s182 + $0x384] sm:$0xf]
        %v435 = vld [vmem:[%s182 + $0x388] sm:$0xf]
        %v436 = vld [vmem:[%s182 + $0x38c] sm:$0xf]
        %v437 = vld [vmem:[%s182 + $0x390] sm:$0xf]
        %v438 = vld [vmem:[%s182 + $0x394] sm:$0xf]
        %v439 = vld [vmem:[%s182 + $0x398] sm:$0xf]
        %v440 = vld [vmem:[%s182 + $0x39c] sm:$0xf]
        %v441 = vld [vmem:[%s182 + $0x3a0] sm:$0xf]
        %v442 = vld [vmem:[%s182 + $0x3a4] sm:$0xf]
        %v443 = vld [vmem:[%s182 + $0x3a8] sm:$0xf]
        %v444 = vld [vmem:[%s182 + $0x3ac] sm:$0xf]
        %v445 = vld [vmem:[%s182 + $0x3b0] sm:$0xf]
        %v446 = vld [vmem:[%s182 + $0x3b4] sm:$0xf]
        %v447 = vld [vmem:[%s182 + $0x3b8] sm:$0xf]
        %v448 = vld [vmem:[%s182 + $0x3bc] sm:$0xf]
        %v449 = vld [vmem:[%s182 + $0x3c0] sm:$0xf]
        %v450 = vld [vmem:[%s182 + $0x3c4] sm:$0xf]
        %v451 = vld [vmem:[%s182 + $0x3c8] sm:$0xf]
        %v452 = vld [vmem:[%s182 + $0x3cc] sm:$0xf]
        %v453 = vld [vmem:[%s182 + $0x3d0] sm:$0xf]
        %v454 = vld [vmem:[%s182 + $0x3d4] sm:$0xf]
        %v455 = vld [vmem:[%s182 + $0x3d8] sm:$0xf]
        %v456 = vld [vmem:[%s182 + $0x3dc] sm:$0xf]
        %v457 = vld [vmem:[%s182 + $0x3e0] sm:$0xf]
        %v458 = vld [vmem:[%s182 + $0x3e4] sm:$0xf]
        %v459 = vld [vmem:[%s182 + $0x3e8] sm:$0xf]
        %v460 = vld [vmem:[%s182 + $0x3ec] sm:$0xf]
        %v461 = vld [vmem:[%s182 + $0x3f0] sm:$0xf]
        %v462 = vld [vmem:[%s182 + $0x3f4] sm:$0xf]
        %v463 = vld [vmem:[%s182 + $0x3f8] sm:$0xf]
        %v464 = vld [vmem:[%s182 + $0x3fc] sm:$0xf]
        %v465 = vld [vmem:[%s182 + $0x400] sm:$0xf]
        %v466 = vld [vmem:[%s182 + $0x404] sm:$0xf]
        %v467 = vld [vmem:[%s182 + $0x408] sm:$0xf]
        %v468 = vld [vmem:[%s182 + $0x40c] sm:$0xf]
        %v469 = vld [vmem:[%s182 + $0x410] sm:$0xf]
        %v470 = vld [vmem:[%s182 + $0x414] sm:$0xf]
        %v471 = vld [vmem:[%s182 + $0x418] sm:$0xf]
        %v472 = vld [vmem:[%s182 + $0x41c] sm:$0xf]
        %v473 = vld [vmem:[%s182 + $0x420] sm:$0xf]
        %v474 = vld [vmem:[%s182 + $0x424] sm:$0xf]
        %v475 = vld [vmem:[%s182 + $0x428] sm:$0xf]
        %v476 = vld [vmem:[%s182 + $0x42c] sm:$0xf]
        %v477 = vld [vmem:[%s182 + $0x430] sm:$0xf]
        %v478 = vld [vmem:[%s182 + $0x434] sm:$0xf]
        %v479 = vld [vmem:[%s182 + $0x438] sm:$0xf]
        %v480 = vld [vmem:[%s182 + $0x43c] sm:$0xf]
        %v481 = vld [vmem:[%s182 + $0x440] sm:$0xf]
        %v482 = vld [vmem:[%s182 + $0x444] sm:$0xf]
        %v483 = vld [vmem:[%s182 + $0x448] sm:$0xf]
        %v484 = vld [vmem:[%s182 + $0x44c] sm:$0xf]
        %v485 = vld [vmem:[%s182 + $0x450] sm:$0xf]
        %v486 = vld [vmem:[%s182 + $0x454] sm:$0xf]
        %v487 = vld [vmem:[%s182 + $0x458] sm:$0xf]
        %v488 = vld [vmem:[%s182 + $0x45c] sm:$0xf]
        %v489 = vld [vmem:[%s182 + $0x460] sm:$0xf]
        %v490 = vld [vmem:[%s182 + $0x464] sm:$0xf]
        %v491 = vld [vmem:[%s182 + $0x468] sm:$0xf]
        %v492 = vld [vmem:[%s182 + $0x46c] sm:$0xf]
        %v493 = vld [vmem:[%s182 + $0x470] sm:$0xf]
        %v494 = vld [vmem:[%s182 + $0x474] sm:$0xf]
        %v495 = vld [vmem:[%s182 + $0x478] sm:$0xf]
        %v496 = vld [vmem:[%s182 + $0x47c] sm:$0xf]
        %v497 = vld [vmem:[%s182 + $0x480] sm:$0xf]
        %v498 = vld [vmem:[%s182 + $0x484] sm:$0xf]
        %v499 = vld [vmem:[%s182 + $0x488] sm:$0xf]
        %v500 = vld [vmem:[%s182 + $0x48c] sm:$0xf]
        %v501 = vld [vmem:[%s182 + $0x490] sm:$0xf]
        %v502 = vld [vmem:[%s182 + $0x494] sm:$0xf]
        %v503 = vld [vmem:[%s182 + $0x498] sm:$0xf]
        %v504 = vld [vmem:[%s182 + $0x49c] sm:$0xf]
        %v505 = vld [vmem:[%s182 + $0x4a0] sm:$0xf]
        %v506 = vld [vmem:[%s182 + $0x4a4] sm:$0xf]
        %v507 = vld [vmem:[%s182 + $0x4a8] sm:$0xf]
        %v508 = vld [vmem:[%s182 + $0x4ac] sm:$0xf]
        %v509 = vld [vmem:[%s182 + $0x4b0] sm:$0xf]
        %v510 = vld [vmem:[%s182 + $0x4b4] sm:$0xf]
        %v511 = vld [vmem:[%s182 + $0x4b8] sm:$0xf]
        %v512 = vld [vmem:[%s182 + $0x4bc] sm:$0xf]
        %v513 = vld [vmem:[%s182 + $0x4c0] sm:$0xf]
        %v514 = vld [vmem:[%s182 + $0x4c4] sm:$0xf]
        %v515 = vld [vmem:[%s182 + $0x4c8] sm:$0xf]
        %v516 = vld [vmem:[%s182 + $0x4cc] sm:$0xf]
        %v517 = vld [vmem:[%s182 + $0x4d0] sm:$0xf]
        %v518 = vld [vmem:[%s182 + $0x4d4] sm:$0xf]
        %v519 = vld [vmem:[%s182 + $0x4d8] sm:$0xf]
        %v520 = vld [vmem:[%s182 + $0x4dc] sm:$0xf]
        %v521 = vld [vmem:[%s182 + $0x4e0] sm:$0xf]
        %v522 = vld [vmem:[%s182 + $0x4e4] sm:$0xf]
        %v523 = vld [vmem:[%s182 + $0x4e8] sm:$0xf]
        %v524 = vld [vmem:[%s182 + $0x4ec] sm:$0xf]
        %v525 = vld [vmem:[%s182 + $0x4f0] sm:$0xf]
        %v526 = vld [vmem:[%s182 + $0x4f4] sm:$0xf]
        %v527 = vld [vmem:[%s182 + $0x4f8] sm:$0xf]
        %v528 = vld [vmem:[%s182 + $0x4fc] sm:$0xf]
        %v529 = vld [vmem:[%s182 + $0x500] sm:$0xf]
        %v530 = vld [vmem:[%s182 + $0x504] sm:$0xf]
        %v531 = vld [vmem:[%s182 + $0x508] sm:$0xf]
        %v532 = vld [vmem:[%s182 + $0x50c] sm:$0xf]
        %v533 = vld [vmem:[%s182 + $0x510] sm:$0xf]
        %v534 = vld [vmem:[%s182 + $0x514] sm:$0xf]
        %v535 = vld [vmem:[%s182 + $0x518] sm:$0xf]
        %v536 = vld [vmem:[%s182 + $0x51c] sm:$0xf]
        %v537 = vld [vmem:[%s182 + $0x520] sm:$0xf]
        %v538 = vld [vmem:[%s182 + $0x524] sm:$0xf]
        %v539 = vld [vmem:[%s182 + $0x528] sm:$0xf]
        %v540 = vld [vmem:[%s182 + $0x52c] sm:$0xf]
        %v541 = vld [vmem:[%s182 + $0x530] sm:$0xf]
        %v542 = vld [vmem:[%s182 + $0x534] sm:$0xf]
        %v543 = vld [vmem:[%s182 + $0x538] sm:$0xf]
        %v544 = vld [vmem:[%s182 + $0x53c] sm:$0xf]
        %v545 = vld [vmem:[%s182 + $0x540] sm:$0xf]
        %v546 = vld [vmem:[%s182 + $0x544] sm:$0xf]
        %v547 = vld [vmem:[%s182 + $0x548] sm:$0xf]
        %v548 = vld [vmem:[%s182 + $0x54c] sm:$0xf]
        %v549 = vld [vmem:[%s182 + $0x550] sm:$0xf]
        %v550 = vld [vmem:[%s182 + $0x554] sm:$0xf]
        %v551 = vld [vmem:[%s182 + $0x558] sm:$0xf]
        %v552 = vld [vmem:[%s182 + $0x55c] sm:$0xf]
        %v553 = vld [vmem:[%s182 + $0x560] sm:$0xf]
        %v554 = vld [vmem:[%s182 + $0x564] sm:$0xf]
        %v555 = vld [vmem:[%s182 + $0x568] sm:$0xf]
        %v556 = vld [vmem:[%s182 + $0x56c] sm:$0xf]
        %v557 = vld [vmem:[%s182 + $0x570] sm:$0xf]
        %v558 = vld [vmem:[%s182 + $0x574] sm:$0xf]
        %v559 = vld [vmem:[%s182 + $0x578] sm:$0xf]
        %v560 = vld [vmem:[%s182 + $0x57c] sm:$0xf]
        %v561 = vld [vmem:[%s182 + $0x580] sm:$0xf]
        %v562 = vld [vmem:[%s182 + $0x584] sm:$0xf]
        %v563 = vld [vmem:[%s182 + $0x588] sm:$0xf]
        %v564 = vld [vmem:[%s182 + $0x58c] sm:$0xf]
        %v565 = vld [vmem:[%s182 + $0x590] sm:$0xf]
        %v566 = vld [vmem:[%s182 + $0x594] sm:$0xf]
        %v567 = vld [vmem:[%s182 + $0x598] sm:$0xf]
        %v568 = vld [vmem:[%s182 + $0x59c] sm:$0xf]
        %v569 = vld [vmem:[%s182 + $0x5a0] sm:$0xf]
        %v570 = vld [vmem:[%s182 + $0x5a4] sm:$0xf]
        %v571 = vld [vmem:[%s182 + $0x5a8] sm:$0xf]
        %v572 = vld [vmem:[%s182 + $0x5ac] sm:$0xf]
        %v573 = vld [vmem:[%s182 + $0x5b0] sm:$0xf]
        %v574 = vld [vmem:[%s182 + $0x5b4] sm:$0xf]
        %v575 = vld [vmem:[%s182 + $0x5b8] sm:$0xf]
        %v576 = vld [vmem:[%s182 + $0x5bc] sm:$0xf]
        %v577 = vld [vmem:[%s182 + $0x5c0] sm:$0xf]
        %v578 = vld [vmem:[%s182 + $0x5c4] sm:$0xf]
        %v579 = vld [vmem:[%s182 + $0x5c8] sm:$0xf]
        %v580 = vld [vmem:[%s182 + $0x5cc] sm:$0xf]
        %v581 = vld [vmem:[%s182 + $0x5d0] sm:$0xf]
        %v582 = vld [vmem:[%s182 + $0x5d4] sm:$0xf]
        %v583 = vld [vmem:[%s182 + $0x5d8] sm:$0xf]
        %v584 = vld [vmem:[%s182 + $0x5dc] sm:$0xf]
        %v585 = vld [vmem:[%s182 + $0x5e0] sm:$0xf]
        %v586 = vld [vmem:[%s182 + $0x5e4] sm:$0xf]
        %v587 = vld [vmem:[%s182 + $0x5e8] sm:$0xf]
        %v588 = vld [vmem:[%s182 + $0x5ec] sm:$0xf]
        %v589 = vld [vmem:[%s182 + $0x5f0] sm:$0xf]
        %v590 = vld [vmem:[%s182 + $0x5f4] sm:$0xf]
        %v591 = vld [vmem:[%s182 + $0x5f8] sm:$0xf]
        %v592 = vld [vmem:[%s182 + $0x5fc] sm:$0xf]
        %v593 = vld [vmem:[%s182 + $0x600] sm:$0xf]
        %v594 = vld [vmem:[%s182 + $0x604] sm:$0xf]
        %v595 = vld [vmem:[%s182 + $0x608] sm:$0xf]
        %v596 = vld [vmem:[%s182 + $0x60c] sm:$0xf]
        %v597 = vld [vmem:[%s182 + $0x610] sm:$0xf]
        %v598 = vld [vmem:[%s182 + $0x614] sm:$0xf]
        %v599 = vld [vmem:[%s182 + $0x618] sm:$0xf]
        %v600 = vld [vmem:[%s182 + $0x61c] sm:$0xf]
        %v601 = vld [vmem:[%s182 + $0x620] sm:$0xf]
        %v602 = vld [vmem:[%s182 + $0x624] sm:$0xf]
        %v603 = vld [vmem:[%s182 + $0x628] sm:$0xf]
        %v604 = vld [vmem:[%s182 + $0x62c] sm:$0xf]
        %v605 = vld [vmem:[%s182 + $0x630] sm:$0xf]
        %v606 = vld [vmem:[%s182 + $0x634] sm:$0xf]
        %v607 = vld [vmem:[%s182 + $0x638] sm:$0xf]
        %v608 = vld [vmem:[%s182 + $0x63c] sm:$0xf]
        %v609 = vld [vmem:[%s182 + $0x640] sm:$0xf]
        %v610 = vld [vmem:[%s182 + $0x644] sm:$0xf]
        %v611 = vld [vmem:[%s182 + $0x648] sm:$0xf]
        %v612 = vld [vmem:[%s182 + $0x64c] sm:$0xf]
        %v613 = vld [vmem:[%s182 + $0x650] sm:$0xf]
        %v614 = vld [vmem:[%s182 + $0x654] sm:$0xf]
        %v615 = vld [vmem:[%s182 + $0x658] sm:$0xf]
        %v616 = vld [vmem:[%s182 + $0x65c] sm:$0xf]
        %v617 = vld [vmem:[%s182 + $0x660] sm:$0xf]
        %v618 = vld [vmem:[%s182 + $0x664] sm:$0xf]
        %v619 = vld [vmem:[%s182 + $0x668] sm:$0xf]
        %v620 = vld [vmem:[%s182 + $0x66c] sm:$0xf]
        %v621 = vld [vmem:[%s182 + $0x670] sm:$0xf]
        %v622 = vld [vmem:[%s182 + $0x674] sm:$0xf]
        %v623 = vld [vmem:[%s182 + $0x678] sm:$0xf]
        %v624 = vld [vmem:[%s182 + $0x67c] sm:$0xf]
        %v625 = vld [vmem:[%s182 + $0x680] sm:$0xf]
        %v626 = vld [vmem:[%s182 + $0x684] sm:$0xf]
        %v627 = vld [vmem:[%s182 + $0x688] sm:$0xf]
        %v628 = vld [vmem:[%s182 + $0x68c] sm:$0xf]
        %v629 = vld [vmem:[%s182 + $0x690] sm:$0xf]
        %v630 = vld [vmem:[%s182 + $0x694] sm:$0xf]
        %v631 = vld [vmem:[%s182 + $0x698] sm:$0xf]
        %v632 = vld [vmem:[%s182 + $0x69c] sm:$0xf]
        %v633 = vld [vmem:[%s182 + $0x6a0] sm:$0xf]
        %v634 = vld [vmem:[%s182 + $0x6a4] sm:$0xf]
        %v635 = vld [vmem:[%s182 + $0x6a8] sm:$0xf]
        %v636 = vld [vmem:[%s182 + $0x6ac] sm:$0xf]
        %v637 = vld [vmem:[%s182 + $0x6b0] sm:$0xf]
        %v638 = vld [vmem:[%s182 + $0x6b4] sm:$0xf]
        %v639 = vld [vmem:[%s182 + $0x6b8] sm:$0xf]
        %v640 = vld [vmem:[%s182 + $0x6bc] sm:$0xf]
        %v641 = vld [vmem:[%s182 + $0x6c0] sm:$0xf]
        %v642 = vld [vmem:[%s182 + $0x6c4] sm:$0xf]
        %v643 = vld [vmem:[%s182 + $0x6c8] sm:$0xf]
        %v644 = vld [vmem:[%s182 + $0x6cc] sm:$0xf]
        %v645 = vld [vmem:[%s182 + $0x6d0] sm:$0xf]
        %v646 = vld [vmem:[%s182 + $0x6d4] sm:$0xf]
        %v647 = vld [vmem:[%s182 + $0x6d8] sm:$0xf]
        %v648 = vld [vmem:[%s182 + $0x6dc] sm:$0xf]
        %v649 = vld [vmem:[%s182 + $0x6e0] sm:$0xf]
        %v650 = vld [vmem:[%s182 + $0x6e4] sm:$0xf]
        %v651 = vld [vmem:[%s182 + $0x6e8] sm:$0xf]
        %v652 = vld [vmem:[%s182 + $0x6ec] sm:$0xf]
        %v653 = vld [vmem:[%s182 + $0x6f0] sm:$0xf]
        %v654 = vld [vmem:[%s182 + $0x6f4] sm:$0xf]
        %v655 = vld [vmem:[%s182 + $0x6f8] sm:$0xf]
        %v656 = vld [vmem:[%s182 + $0x6fc] sm:$0xf]
        %v1105 = vunpack.c.l.b16 %v209
        %v1106 = vunpack.c.l.b16 %v210
        %v1107 = vunpack.c.l.b16 %v211
        %v1108 = vunpack.c.l.b16 %v212
        %v1109 = vunpack.c.l.b16 %v213
        %v1110 = vunpack.c.l.b16 %v214
        %v1111 = vunpack.c.l.b16 %v215
        %v1112 = vunpack.c.l.b16 %v216
        %v1113 = vunpack.c.l.b16 %v217
        %v1114 = vunpack.c.l.b16 %v218
        %v1115 = vunpack.c.l.b16 %v219
        %v1116 = vunpack.c.l.b16 %v220
        %v1117 = vunpack.c.l.b16 %v221
        %v1118 = vunpack.c.l.b16 %v222
        %v1119 = vunpack.c.l.b16 %v223
        %v1120 = vunpack.c.l.b16 %v224
        %v1121 = vunpack.c.l.b16 %v225
        %v1122 = vunpack.c.l.b16 %v226
        %v1123 = vunpack.c.l.b16 %v227
        %v1124 = vunpack.c.l.b16 %v228
        %v1125 = vunpack.c.l.b16 %v229
        %v1126 = vunpack.c.l.b16 %v230
        %v1127 = vunpack.c.l.b16 %v231
        %v1128 = vunpack.c.l.b16 %v232
        %v1129 = vunpack.c.l.b16 %v233
        %v1130 = vunpack.c.l.b16 %v234
        %v1131 = vunpack.c.l.b16 %v235
        %v1132 = vunpack.c.l.b16 %v236
        %v1133 = vunpack.c.l.b16 %v237
        %v1134 = vunpack.c.l.b16 %v238
        %v1135 = vunpack.c.l.b16 %v239
        %v1136 = vunpack.c.l.b16 %v240
        %v1137 = vunpack.c.l.b16 %v241
        %v1138 = vunpack.c.l.b16 %v242
        %v1139 = vunpack.c.l.b16 %v243
        %v1140 = vunpack.c.l.b16 %v244
        %v1141 = vunpack.c.l.b16 %v245
        %v1142 = vunpack.c.l.b16 %v246
        %v1143 = vunpack.c.l.b16 %v247
        %v1144 = vunpack.c.l.b16 %v248
        %v1145 = vunpack.c.l.b16 %v249
        %v1146 = vunpack.c.l.b16 %v250
        %v1147 = vunpack.c.l.b16 %v251
        %v1148 = vunpack.c.l.b16 %v252
        %v1149 = vunpack.c.l.b16 %v253
        %v1150 = vunpack.c.l.b16 %v254
        %v1151 = vunpack.c.l.b16 %v255
        %v1152 = vunpack.c.l.b16 %v256
        %v1153 = vunpack.c.l.b16 %v257
        %v1154 = vunpack.c.l.b16 %v258
        %v1155 = vunpack.c.l.b16 %v259
        %v1156 = vunpack.c.l.b16 %v260
        %v1157 = vunpack.c.l.b16 %v261
        %v1158 = vunpack.c.l.b16 %v262
        %v1159 = vunpack.c.l.b16 %v263
        %v1160 = vunpack.c.l.b16 %v264
        %v1161 = vunpack.c.l.b16 %v265
        %v1162 = vunpack.c.l.b16 %v266
        %v1163 = vunpack.c.l.b16 %v267
        %v1164 = vunpack.c.l.b16 %v268
        %v1165 = vunpack.c.l.b16 %v269
        %v1166 = vunpack.c.l.b16 %v270
        %v1167 = vunpack.c.l.b16 %v271
        %v1168 = vunpack.c.l.b16 %v272
        %v1169 = vunpack.c.l.b16 %v273
        %v1170 = vunpack.c.l.b16 %v274
        %v1171 = vunpack.c.l.b16 %v275
        %v1172 = vunpack.c.l.b16 %v276
        %v1173 = vunpack.c.l.b16 %v277
        %v1174 = vunpack.c.l.b16 %v278
        %v1175 = vunpack.c.l.b16 %v279
        %v1176 = vunpack.c.l.b16 %v280
        %v1177 = vunpack.c.l.b16 %v281
        %v1178 = vunpack.c.l.b16 %v282
        %v1179 = vunpack.c.l.b16 %v283
        %v1180 = vunpack.c.l.b16 %v284
        %v1181 = vunpack.c.l.b16 %v285
        %v1182 = vunpack.c.l.b16 %v286
        %v1183 = vunpack.c.l.b16 %v287
        %v1184 = vunpack.c.l.b16 %v288
        %v1185 = vunpack.c.l.b16 %v289
        %v1186 = vunpack.c.l.b16 %v290
        %v1187 = vunpack.c.l.b16 %v291
        %v1188 = vunpack.c.l.b16 %v292
        %v1189 = vunpack.c.l.b16 %v293
        %v1190 = vunpack.c.l.b16 %v294
        %v1191 = vunpack.c.l.b16 %v295
        %v1192 = vunpack.c.l.b16 %v296
        %v1193 = vunpack.c.l.b16 %v297
        %v1194 = vunpack.c.l.b16 %v298
        %v1195 = vunpack.c.l.b16 %v299
        %v1196 = vunpack.c.l.b16 %v300
        %v1197 = vunpack.c.l.b16 %v301
        %v1198 = vunpack.c.l.b16 %v302
        %v1199 = vunpack.c.l.b16 %v303
        %v1200 = vunpack.c.l.b16 %v304
        %v1201 = vunpack.c.l.b16 %v305
        %v1202 = vunpack.c.l.b16 %v306
        %v1203 = vunpack.c.l.b16 %v307
        %v1204 = vunpack.c.l.b16 %v308
        %v1205 = vunpack.c.l.b16 %v309
        %v1206 = vunpack.c.l.b16 %v310
        %v1207 = vunpack.c.l.b16 %v311
        %v1208 = vunpack.c.l.b16 %v312
        %v1209 = vunpack.c.l.b16 %v313
        %v1210 = vunpack.c.l.b16 %v314
        %v1211 = vunpack.c.l.b16 %v315
        %v1212 = vunpack.c.l.b16 %v316
        %v1213 = vunpack.c.l.b16 %v317
        %v1214 = vunpack.c.l.b16 %v318
        %v1215 = vunpack.c.l.b16 %v319
        %v1216 = vunpack.c.l.b16 %v320
        %v1217 = vunpack.c.l.b16 %v321
        %v1218 = vunpack.c.l.b16 %v322
        %v1219 = vunpack.c.l.b16 %v323
        %v1220 = vunpack.c.l.b16 %v324
        %v1221 = vunpack.c.l.b16 %v325
        %v1222 = vunpack.c.l.b16 %v326
        %v1223 = vunpack.c.l.b16 %v327
        %v1224 = vunpack.c.l.b16 %v328
        %v1225 = vunpack.c.l.b16 %v329
        %v1226 = vunpack.c.l.b16 %v330
        %v1227 = vunpack.c.l.b16 %v331
        %v1228 = vunpack.c.l.b16 %v332
        %v1229 = vunpack.c.l.b16 %v333
        %v1230 = vunpack.c.l.b16 %v334
        %v1231 = vunpack.c.l.b16 %v335
        %v1232 = vunpack.c.l.b16 %v336
        %v1233 = vunpack.c.l.b16 %v337
        %v1234 = vunpack.c.l.b16 %v338
        %v1235 = vunpack.c.l.b16 %v339
        %v1236 = vunpack.c.l.b16 %v340
        %v1237 = vunpack.c.l.b16 %v341
        %v1238 = vunpack.c.l.b16 %v342
        %v1239 = vunpack.c.l.b16 %v343
        %v1240 = vunpack.c.l.b16 %v344
        %v1241 = vunpack.c.l.b16 %v345
        %v1242 = vunpack.c.l.b16 %v346
        %v1243 = vunpack.c.l.b16 %v347
        %v1244 = vunpack.c.l.b16 %v348
        %v1245 = vunpack.c.l.b16 %v349
        %v1246 = vunpack.c.l.b16 %v350
        %v1247 = vunpack.c.l.b16 %v351
        %v1248 = vunpack.c.l.b16 %v352
        %v1249 = vunpack.c.l.b16 %v353
        %v1250 = vunpack.c.l.b16 %v354
        %v1251 = vunpack.c.l.b16 %v355
        %v1252 = vunpack.c.l.b16 %v356
        %v1253 = vunpack.c.l.b16 %v357
        %v1254 = vunpack.c.l.b16 %v358
        %v1255 = vunpack.c.l.b16 %v359
        %v1256 = vunpack.c.l.b16 %v360
        %v1257 = vunpack.c.l.b16 %v361
        %v1258 = vunpack.c.l.b16 %v362
        %v1259 = vunpack.c.l.b16 %v363
        %v1260 = vunpack.c.l.b16 %v364
        %v1261 = vunpack.c.l.b16 %v365
        %v1262 = vunpack.c.l.b16 %v366
        %v1263 = vunpack.c.l.b16 %v367
        %v1264 = vunpack.c.l.b16 %v368
        %v1265 = vunpack.c.l.b16 %v369
        %v1266 = vunpack.c.l.b16 %v370
        %v1267 = vunpack.c.l.b16 %v371
        %v1268 = vunpack.c.l.b16 %v372
        %v1269 = vunpack.c.l.b16 %v373
        %v1270 = vunpack.c.l.b16 %v374
        %v1271 = vunpack.c.l.b16 %v375
        %v1272 = vunpack.c.l.b16 %v376
        %v1273 = vunpack.c.l.b16 %v377
        %v1274 = vunpack.c.l.b16 %v378
        %v1275 = vunpack.c.l.b16 %v379
        %v1276 = vunpack.c.l.b16 %v380
        %v1277 = vunpack.c.l.b16 %v381
        %v1278 = vunpack.c.l.b16 %v382
        %v1279 = vunpack.c.l.b16 %v383
        %v1280 = vunpack.c.l.b16 %v384
        %v1281 = vunpack.c.l.b16 %v385
        %v1282 = vunpack.c.l.b16 %v386
        %v1283 = vunpack.c.l.b16 %v387
        %v1284 = vunpack.c.l.b16 %v388
        %v1285 = vunpack.c.l.b16 %v389
        %v1286 = vunpack.c.l.b16 %v390
        %v1287 = vunpack.c.l.b16 %v391
        %v1288 = vunpack.c.l.b16 %v392
        %v1289 = vunpack.c.l.b16 %v393
        %v1290 = vunpack.c.l.b16 %v394
        %v1291 = vunpack.c.l.b16 %v395
        %v1292 = vunpack.c.l.b16 %v396
        %v1293 = vunpack.c.l.b16 %v397
        %v1294 = vunpack.c.l.b16 %v398
        %v1295 = vunpack.c.l.b16 %v399
        %v1296 = vunpack.c.l.b16 %v400
        %v1297 = vunpack.c.l.b16 %v401
        %v1298 = vunpack.c.l.b16 %v402
        %v1299 = vunpack.c.l.b16 %v403
        %v1300 = vunpack.c.l.b16 %v404
        %v1301 = vunpack.c.l.b16 %v405
        %v1302 = vunpack.c.l.b16 %v406
        %v1303 = vunpack.c.l.b16 %v407
        %v1304 = vunpack.c.l.b16 %v408
        %v1305 = vunpack.c.l.b16 %v409
        %v1306 = vunpack.c.l.b16 %v410
        %v1307 = vunpack.c.l.b16 %v411
        %v1308 = vunpack.c.l.b16 %v412
        %v1309 = vunpack.c.l.b16 %v413
        %v1310 = vunpack.c.l.b16 %v414
        %v1311 = vunpack.c.l.b16 %v415
        %v1312 = vunpack.c.l.b16 %v416
        %v1313 = vunpack.c.l.b16 %v417
        %v1314 = vunpack.c.l.b16 %v418
        %v1315 = vunpack.c.l.b16 %v419
        %v1316 = vunpack.c.l.b16 %v420
        %v1317 = vunpack.c.l.b16 %v421
        %v1318 = vunpack.c.l.b16 %v422
        %v1319 = vunpack.c.l.b16 %v423
        %v1320 = vunpack.c.l.b16 %v424
        %v1321 = vunpack.c.l.b16 %v425
        %v1322 = vunpack.c.l.b16 %v426
        %v1323 = vunpack.c.l.b16 %v427
        %v1324 = vunpack.c.l.b16 %v428
        %v1325 = vunpack.c.l.b16 %v429
        %v1326 = vunpack.c.l.b16 %v430
        %v1327 = vunpack.c.l.b16 %v431
        %v1328 = vunpack.c.l.b16 %v432
        %v1329 = vunpack.c.l.b16 %v433
        %v1330 = vunpack.c.l.b16 %v434
        %v1331 = vunpack.c.l.b16 %v435
        %v1332 = vunpack.c.l.b16 %v436
        %v1333 = vunpack.c.l.b16 %v437
        %v1334 = vunpack.c.l.b16 %v438
        %v1335 = vunpack.c.l.b16 %v439
        %v1336 = vunpack.c.l.b16 %v440
        %v1337 = vunpack.c.l.b16 %v441
        %v1338 = vunpack.c.l.b16 %v442
        %v1339 = vunpack.c.l.b16 %v443
        %v1340 = vunpack.c.l.b16 %v444
        %v1341 = vunpack.c.l.b16 %v445
        %v1342 = vunpack.c.l.b16 %v446
        %v1343 = vunpack.c.l.b16 %v447
        %v1344 = vunpack.c.l.b16 %v448
        %v1345 = vunpack.c.l.b16 %v449
        %v1346 = vunpack.c.l.b16 %v450
        %v1347 = vunpack.c.l.b16 %v451
        %v1348 = vunpack.c.l.b16 %v452
        %v1349 = vunpack.c.l.b16 %v453
        %v1350 = vunpack.c.l.b16 %v454
        %v1351 = vunpack.c.l.b16 %v455
        %v1352 = vunpack.c.l.b16 %v456
        %v1353 = vunpack.c.l.b16 %v457
        %v1354 = vunpack.c.l.b16 %v458
        %v1355 = vunpack.c.l.b16 %v459
        %v1356 = vunpack.c.l.b16 %v460
        %v1357 = vunpack.c.l.b16 %v461
        %v1358 = vunpack.c.l.b16 %v462
        %v1359 = vunpack.c.l.b16 %v463
        %v1360 = vunpack.c.l.b16 %v464
        %v1361 = vunpack.c.l.b16 %v465
        %v1362 = vunpack.c.l.b16 %v466
        %v1363 = vunpack.c.l.b16 %v467
        %v1364 = vunpack.c.l.b16 %v468
        %v1365 = vunpack.c.l.b16 %v469
        %v1366 = vunpack.c.l.b16 %v470
        %v1367 = vunpack.c.l.b16 %v471
        %v1368 = vunpack.c.l.b16 %v472
        %v1369 = vunpack.c.l.b16 %v473
        %v1370 = vunpack.c.l.b16 %v474
        %v1371 = vunpack.c.l.b16 %v475
        %v1372 = vunpack.c.l.b16 %v476
        %v1373 = vunpack.c.l.b16 %v477
        %v1374 = vunpack.c.l.b16 %v478
        %v1375 = vunpack.c.l.b16 %v479
        %v1376 = vunpack.c.l.b16 %v480
        %v1377 = vunpack.c.l.b16 %v481
        %v1378 = vunpack.c.l.b16 %v482
        %v1379 = vunpack.c.l.b16 %v483
        %v1380 = vunpack.c.l.b16 %v484
        %v1381 = vunpack.c.l.b16 %v485
        %v1382 = vunpack.c.l.b16 %v486
        %v1383 = vunpack.c.l.b16 %v487
        %v1384 = vunpack.c.l.b16 %v488
        %v1385 = vunpack.c.l.b16 %v489
        %v1386 = vunpack.c.l.b16 %v490
        %v1387 = vunpack.c.l.b16 %v491
        %v1388 = vunpack.c.l.b16 %v492
        %v1389 = vunpack.c.l.b16 %v493
        %v1390 = vunpack.c.l.b16 %v494
        %v1391 = vunpack.c.l.b16 %v495
        %v1392 = vunpack.c.l.b16 %v496
        %v1393 = vunpack.c.l.b16 %v497
        %v1394 = vunpack.c.l.b16 %v498
        %v1395 = vunpack.c.l.b16 %v499
        %v1396 = vunpack.c.l.b16 %v500
        %v1397 = vunpack.c.l.b16 %v501
        %v1398 = vunpack.c.l.b16 %v502
        %v1399 = vunpack.c.l.b16 %v503
        %v1400 = vunpack.c.l.b16 %v504
        %v1401 = vunpack.c.l.b16 %v505
        %v1402 = vunpack.c.l.b16 %v506
        %v1403 = vunpack.c.l.b16 %v507
        %v1404 = vunpack.c.l.b16 %v508
        %v1405 = vunpack.c.l.b16 %v509
        %v1406 = vunpack.c.l.b16 %v510
        %v1407 = vunpack.c.l.b16 %v511
        %v1408 = vunpack.c.l.b16 %v512
        %v1409 = vunpack.c.l.b16 %v513
        %v1410 = vunpack.c.l.b16 %v514
        %v1411 = vunpack.c.l.b16 %v515
        %v1412 = vunpack.c.l.b16 %v516
        %v1413 = vunpack.c.l.b16 %v517
        %v1414 = vunpack.c.l.b16 %v518
        %v1415 = vunpack.c.l.b16 %v519
        %v1416 = vunpack.c.l.b16 %v520
        %v1417 = vunpack.c.l.b16 %v521
        %v1418 = vunpack.c.l.b16 %v522
        %v1419 = vunpack.c.l.b16 %v523
        %v1420 = vunpack.c.l.b16 %v524
        %v1421 = vunpack.c.l.b16 %v525
        %v1422 = vunpack.c.l.b16 %v526
        %v1423 = vunpack.c.l.b16 %v527
        %v1424 = vunpack.c.l.b16 %v528
        %v1425 = vunpack.c.l.b16 %v529
        %v1426 = vunpack.c.l.b16 %v530
        %v1427 = vunpack.c.l.b16 %v531
        %v1428 = vunpack.c.l.b16 %v532
        %v1429 = vunpack.c.l.b16 %v533
        %v1430 = vunpack.c.l.b16 %v534
        %v1431 = vunpack.c.l.b16 %v535
        %v1432 = vunpack.c.l.b16 %v536
        %v1433 = vunpack.c.l.b16 %v537
        %v1434 = vunpack.c.l.b16 %v538
        %v1435 = vunpack.c.l.b16 %v539
        %v1436 = vunpack.c.l.b16 %v540
        %v1437 = vunpack.c.l.b16 %v541
        %v1438 = vunpack.c.l.b16 %v542
        %v1439 = vunpack.c.l.b16 %v543
        %v1440 = vunpack.c.l.b16 %v544
        %v1441 = vunpack.c.l.b16 %v545
        %v1442 = vunpack.c.l.b16 %v546
        %v1443 = vunpack.c.l.b16 %v547
        %v1444 = vunpack.c.l.b16 %v548
        %v1445 = vunpack.c.l.b16 %v549
        %v1446 = vunpack.c.l.b16 %v550
        %v1447 = vunpack.c.l.b16 %v551
        %v1448 = vunpack.c.l.b16 %v552
        %v1449 = vunpack.c.l.b16 %v553
        %v1450 = vunpack.c.l.b16 %v554
        %v1451 = vunpack.c.l.b16 %v555
        %v1452 = vunpack.c.l.b16 %v556
        %v1453 = vunpack.c.l.b16 %v557
        %v1454 = vunpack.c.l.b16 %v558
        %v1455 = vunpack.c.l.b16 %v559
        %v1456 = vunpack.c.l.b16 %v560
        %v1457 = vunpack.c.l.b16 %v561
        %v1458 = vunpack.c.l.b16 %v562
        %v1459 = vunpack.c.l.b16 %v563
        %v1460 = vunpack.c.l.b16 %v564
        %v1461 = vunpack.c.l.b16 %v565
        %v1462 = vunpack.c.l.b16 %v566
        %v1463 = vunpack.c.l.b16 %v567
        %v1464 = vunpack.c.l.b16 %v568
        %v1465 = vunpack.c.l.b16 %v569
        %v1466 = vunpack.c.l.b16 %v570
        %v1467 = vunpack.c.l.b16 %v571
        %v1468 = vunpack.c.l.b16 %v572
        %v1469 = vunpack.c.l.b16 %v573
        %v1470 = vunpack.c.l.b16 %v574
        %v1471 = vunpack.c.l.b16 %v575
        %v1472 = vunpack.c.l.b16 %v576
        %v1473 = vunpack.c.l.b16 %v577
        %v1474 = vunpack.c.l.b16 %v578
        %v1475 = vunpack.c.l.b16 %v579
        %v1476 = vunpack.c.l.b16 %v580
        %v1477 = vunpack.c.l.b16 %v581
        %v1478 = vunpack.c.l.b16 %v582
        %v1479 = vunpack.c.l.b16 %v583
        %v1480 = vunpack.c.l.b16 %v584
        %v1481 = vunpack.c.l.b16 %v585
        %v1482 = vunpack.c.l.b16 %v586
        %v1483 = vunpack.c.l.b16 %v587
        %v1484 = vunpack.c.l.b16 %v588
        %v1485 = vunpack.c.l.b16 %v589
        %v1486 = vunpack.c.l.b16 %v590
        %v1487 = vunpack.c.l.b16 %v591
        %v1488 = vunpack.c.l.b16 %v592
        %v1489 = vunpack.c.l.b16 %v593
        %v1490 = vunpack.c.l.b16 %v594
        %v1491 = vunpack.c.l.b16 %v595
        %v1492 = vunpack.c.l.b16 %v596
        %v1493 = vunpack.c.l.b16 %v597
        %v1494 = vunpack.c.l.b16 %v598
        %v1495 = vunpack.c.l.b16 %v599
        %v1496 = vunpack.c.l.b16 %v600
        %v1497 = vunpack.c.l.b16 %v601
        %v1498 = vunpack.c.l.b16 %v602
        %v1499 = vunpack.c.l.b16 %v603
        %v1500 = vunpack.c.l.b16 %v604
        %v1501 = vunpack.c.l.b16 %v605
        %v1502 = vunpack.c.l.b16 %v606
        %v1503 = vunpack.c.l.b16 %v607
        %v1504 = vunpack.c.l.b16 %v608
        %v1505 = vunpack.c.l.b16 %v609
        %v1506 = vunpack.c.l.b16 %v610
        %v1507 = vunpack.c.l.b16 %v611
        %v1508 = vunpack.c.l.b16 %v612
        %v1509 = vunpack.c.l.b16 %v613
        %v1510 = vunpack.c.l.b16 %v614
        %v1511 = vunpack.c.l.b16 %v615
        %v1512 = vunpack.c.l.b16 %v616
        %v1513 = vunpack.c.l.b16 %v617
        %v1514 = vunpack.c.l.b16 %v618
        %v1515 = vunpack.c.l.b16 %v619
        %v1516 = vunpack.c.l.b16 %v620
        %v1517 = vunpack.c.l.b16 %v621
        %v1518 = vunpack.c.l.b16 %v622
        %v1519 = vunpack.c.l.b16 %v623
        %v1520 = vunpack.c.l.b16 %v624
        %v1521 = vunpack.c.l.b16 %v625
        %v1522 = vunpack.c.l.b16 %v626
        %v1523 = vunpack.c.l.b16 %v627
        %v1524 = vunpack.c.l.b16 %v628
        %v1525 = vunpack.c.l.b16 %v629
        %v1526 = vunpack.c.l.b16 %v630
        %v1527 = vunpack.c.l.b16 %v631
        %v1528 = vunpack.c.l.b16 %v632
        %v1529 = vunpack.c.l.b16 %v633
        %v1530 = vunpack.c.l.b16 %v634
        %v1531 = vunpack.c.l.b16 %v635
        %v1532 = vunpack.c.l.b16 %v636
        %v1533 = vunpack.c.l.b16 %v637
        %v1534 = vunpack.c.l.b16 %v638
        %v1535 = vunpack.c.l.b16 %v639
        %v1536 = vunpack.c.l.b16 %v640
        %v1537 = vunpack.c.l.b16 %v641
        %v1538 = vunpack.c.l.b16 %v642
        %v1539 = vunpack.c.l.b16 %v643
        %v1540 = vunpack.c.l.b16 %v644
        %v1541 = vunpack.c.l.b16 %v645
        %v1542 = vunpack.c.l.b16 %v646
        %v1543 = vunpack.c.l.b16 %v647
        %v1544 = vunpack.c.l.b16 %v648
        %v1545 = vunpack.c.l.b16 %v649
        %v1546 = vunpack.c.l.b16 %v650
        %v1547 = vunpack.c.l.b16 %v651
        %v1548 = vunpack.c.l.b16 %v652
        %v1549 = vunpack.c.l.b16 %v653
        %v1550 = vunpack.c.l.b16 %v654
        %v1551 = vunpack.c.l.b16 %v655
        %v1552 = vunpack.c.l.b16 %v656
        %v1553 = vpack.c.b16 %v1106, %v1105
        %v1554 = vpack.c.b16 %v1108, %v1107
        %v1555 = vpack.c.b16 %v1110, %v1109
        %v1556 = vpack.c.b16 %v1112, %v1111
        %v1557 = vpack.c.b16 %v1114, %v1113
        %v1558 = vpack.c.b16 %v1116, %v1115
        %v1559 = vpack.c.b16 %v1118, %v1117
        %v1560 = vpack.c.b16 %v1120, %v1119
        %v1561 = vpack.c.b16 %v1122, %v1121
        %v1562 = vpack.c.b16 %v1124, %v1123
        %v1563 = vpack.c.b16 %v1126, %v1125
        %v1564 = vpack.c.b16 %v1128, %v1127
        %v1565 = vpack.c.b16 %v1130, %v1129
        %v1566 = vpack.c.b16 %v1132, %v1131
        %v1567 = vpack.c.b16 %v1134, %v1133
        %v1568 = vpack.c.b16 %v1136, %v1135
        %v1569 = vpack.c.b16 %v1138, %v1137
        %v1570 = vpack.c.b16 %v1140, %v1139
        %v1571 = vpack.c.b16 %v1142, %v1141
        %v1572 = vpack.c.b16 %v1144, %v1143
        %v1573 = vpack.c.b16 %v1146, %v1145
        %v1574 = vpack.c.b16 %v1148, %v1147
        %v1575 = vpack.c.b16 %v1150, %v1149
        %v1576 = vpack.c.b16 %v1152, %v1151
        %v1577 = vpack.c.b16 %v1154, %v1153
        %v1578 = vpack.c.b16 %v1156, %v1155
        %v1579 = vpack.c.b16 %v1158, %v1157
        %v1580 = vpack.c.b16 %v1160, %v1159
        %v1581 = vpack.c.b16 %v1162, %v1161
        %v1582 = vpack.c.b16 %v1164, %v1163
        %v1583 = vpack.c.b16 %v1166, %v1165
        %v1584 = vpack.c.b16 %v1168, %v1167
        %v1585 = vpack.c.b16 %v1170, %v1169
        %v1586 = vpack.c.b16 %v1172, %v1171
        %v1587 = vpack.c.b16 %v1174, %v1173
        %v1588 = vpack.c.b16 %v1176, %v1175
        %v1589 = vpack.c.b16 %v1178, %v1177
        %v1590 = vpack.c.b16 %v1180, %v1179
        %v1591 = vpack.c.b16 %v1182, %v1181
        %v1592 = vpack.c.b16 %v1184, %v1183
        %v1593 = vpack.c.b16 %v1186, %v1185
        %v1594 = vpack.c.b16 %v1188, %v1187
        %v1595 = vpack.c.b16 %v1190, %v1189
        %v1596 = vpack.c.b16 %v1192, %v1191
        %v1597 = vpack.c.b16 %v1194, %v1193
        %v1598 = vpack.c.b16 %v1196, %v1195
        %v1599 = vpack.c.b16 %v1198, %v1197
        %v1600 = vpack.c.b16 %v1200, %v1199
        %v1601 = vpack.c.b16 %v1202, %v1201
        %v1602 = vpack.c.b16 %v1204, %v1203
        %v1603 = vpack.c.b16 %v1206, %v1205
        %v1604 = vpack.c.b16 %v1208, %v1207
        %v1605 = vpack.c.b16 %v1210, %v1209
        %v1606 = vpack.c.b16 %v1212, %v1211
        %v1607 = vpack.c.b16 %v1214, %v1213
        %v1608 = vpack.c.b16 %v1216, %v1215
        %v1609 = vpack.c.b16 %v1218, %v1217
        %v1610 = vpack.c.b16 %v1220, %v1219
        %v1611 = vpack.c.b16 %v1222, %v1221
        %v1612 = vpack.c.b16 %v1224, %v1223
        %v1613 = vpack.c.b16 %v1226, %v1225
        %v1614 = vpack.c.b16 %v1228, %v1227
        %v1615 = vpack.c.b16 %v1230, %v1229
        %v1616 = vpack.c.b16 %v1232, %v1231
        %v1617 = vpack.c.b16 %v1234, %v1233
        %v1618 = vpack.c.b16 %v1236, %v1235
        %v1619 = vpack.c.b16 %v1238, %v1237
        %v1620 = vpack.c.b16 %v1240, %v1239
        %v1621 = vpack.c.b16 %v1242, %v1241
        %v1622 = vpack.c.b16 %v1244, %v1243
        %v1623 = vpack.c.b16 %v1246, %v1245
        %v1624 = vpack.c.b16 %v1248, %v1247
        %v1625 = vpack.c.b16 %v1250, %v1249
        %v1626 = vpack.c.b16 %v1252, %v1251
        %v1627 = vpack.c.b16 %v1254, %v1253
        %v1628 = vpack.c.b16 %v1256, %v1255
        %v1629 = vpack.c.b16 %v1258, %v1257
        %v1630 = vpack.c.b16 %v1260, %v1259
        %v1631 = vpack.c.b16 %v1262, %v1261
        %v1632 = vpack.c.b16 %v1264, %v1263
        %v1633 = vpack.c.b16 %v1266, %v1265
        %v1634 = vpack.c.b16 %v1268, %v1267
        %v1635 = vpack.c.b16 %v1270, %v1269
        %v1636 = vpack.c.b16 %v1272, %v1271
        %v1637 = vpack.c.b16 %v1274, %v1273
        %v1638 = vpack.c.b16 %v1276, %v1275
        %v1639 = vpack.c.b16 %v1278, %v1277
        %v1640 = vpack.c.b16 %v1280, %v1279
        %v1641 = vpack.c.b16 %v1282, %v1281
        %v1642 = vpack.c.b16 %v1284, %v1283
        %v1643 = vpack.c.b16 %v1286, %v1285
        %v1644 = vpack.c.b16 %v1288, %v1287
        %v1645 = vpack.c.b16 %v1290, %v1289
        %v1646 = vpack.c.b16 %v1292, %v1291
        %v1647 = vpack.c.b16 %v1294, %v1293
        %v1648 = vpack.c.b16 %v1296, %v1295
        %v1649 = vpack.c.b16 %v1298, %v1297
        %v1650 = vpack.c.b16 %v1300, %v1299
        %v1651 = vpack.c.b16 %v1302, %v1301
        %v1652 = vpack.c.b16 %v1304, %v1303
        %v1653 = vpack.c.b16 %v1306, %v1305
        %v1654 = vpack.c.b16 %v1308, %v1307
        %v1655 = vpack.c.b16 %v1310, %v1309
        %v1656 = vpack.c.b16 %v1312, %v1311
        %v1657 = vpack.c.b16 %v1314, %v1313
        %v1658 = vpack.c.b16 %v1316, %v1315
        %v1659 = vpack.c.b16 %v1318, %v1317
        %v1660 = vpack.c.b16 %v1320, %v1319
        %v1661 = vpack.c.b16 %v1322, %v1321
        %v1662 = vpack.c.b16 %v1324, %v1323
        %v1663 = vpack.c.b16 %v1326, %v1325
        %v1664 = vpack.c.b16 %v1328, %v1327
        %v1665 = vpack.c.b16 %v1330, %v1329
        %v1666 = vpack.c.b16 %v1332, %v1331
        %v1667 = vpack.c.b16 %v1334, %v1333
        %v1668 = vpack.c.b16 %v1336, %v1335
        %v1669 = vpack.c.b16 %v1338, %v1337
        %v1670 = vpack.c.b16 %v1340, %v1339
        %v1671 = vpack.c.b16 %v1342, %v1341
        %v1672 = vpack.c.b16 %v1344, %v1343
        %v1673 = vpack.c.b16 %v1346, %v1345
        %v1674 = vpack.c.b16 %v1348, %v1347
        %v1675 = vpack.c.b16 %v1350, %v1349
        %v1676 = vpack.c.b16 %v1352, %v1351
        %v1677 = vpack.c.b16 %v1354, %v1353
        %v1678 = vpack.c.b16 %v1356, %v1355
        %v1679 = vpack.c.b16 %v1358, %v1357
        %v1680 = vpack.c.b16 %v1360, %v1359
        %v1681 = vpack.c.b16 %v1362, %v1361
        %v1682 = vpack.c.b16 %v1364, %v1363
        %v1683 = vpack.c.b16 %v1366, %v1365
        %v1684 = vpack.c.b16 %v1368, %v1367
        %v1685 = vpack.c.b16 %v1370, %v1369
        %v1686 = vpack.c.b16 %v1372, %v1371
        %v1687 = vpack.c.b16 %v1374, %v1373
        %v1688 = vpack.c.b16 %v1376, %v1375
        %v1689 = vpack.c.b16 %v1378, %v1377
        %v1690 = vpack.c.b16 %v1380, %v1379
        %v1691 = vpack.c.b16 %v1382, %v1381
        %v1692 = vpack.c.b16 %v1384, %v1383
        %v1693 = vpack.c.b16 %v1386, %v1385
        %v1694 = vpack.c.b16 %v1388, %v1387
        %v1695 = vpack.c.b16 %v1390, %v1389
        %v1696 = vpack.c.b16 %v1392, %v1391
        %v1697 = vpack.c.b16 %v1394, %v1393
        %v1698 = vpack.c.b16 %v1396, %v1395
        %v1699 = vpack.c.b16 %v1398, %v1397
        %v1700 = vpack.c.b16 %v1400, %v1399
        %v1701 = vpack.c.b16 %v1402, %v1401
        %v1702 = vpack.c.b16 %v1404, %v1403
        %v1703 = vpack.c.b16 %v1406, %v1405
        %v1704 = vpack.c.b16 %v1408, %v1407
        %v1705 = vpack.c.b16 %v1410, %v1409
        %v1706 = vpack.c.b16 %v1412, %v1411
        %v1707 = vpack.c.b16 %v1414, %v1413
        %v1708 = vpack.c.b16 %v1416, %v1415
        %v1709 = vpack.c.b16 %v1418, %v1417
        %v1710 = vpack.c.b16 %v1420, %v1419
        %v1711 = vpack.c.b16 %v1422, %v1421
        %v1712 = vpack.c.b16 %v1424, %v1423
        %v1713 = vpack.c.b16 %v1426, %v1425
        %v1714 = vpack.c.b16 %v1428, %v1427
        %v1715 = vpack.c.b16 %v1430, %v1429
        %v1716 = vpack.c.b16 %v1432, %v1431
        %v1717 = vpack.c.b16 %v1434, %v1433
        %v1718 = vpack.c.b16 %v1436, %v1435
        %v1719 = vpack.c.b16 %v1438, %v1437
        %v1720 = vpack.c.b16 %v1440, %v1439
        %v1721 = vpack.c.b16 %v1442, %v1441
        %v1722 = vpack.c.b16 %v1444, %v1443
        %v1723 = vpack.c.b16 %v1446, %v1445
        %v1724 = vpack.c.b16 %v1448, %v1447
        %v1725 = vpack.c.b16 %v1450, %v1449
        %v1726 = vpack.c.b16 %v1452, %v1451
        %v1727 = vpack.c.b16 %v1454, %v1453
        %v1728 = vpack.c.b16 %v1456, %v1455
        %v1729 = vpack.c.b16 %v1458, %v1457
        %v1730 = vpack.c.b16 %v1460, %v1459
        %v1731 = vpack.c.b16 %v1462, %v1461
        %v1732 = vpack.c.b16 %v1464, %v1463
        %v1733 = vpack.c.b16 %v1466, %v1465
        %v1734 = vpack.c.b16 %v1468, %v1467
        %v1735 = vpack.c.b16 %v1470, %v1469
        %v1736 = vpack.c.b16 %v1472, %v1471
        %v1737 = vpack.c.b16 %v1474, %v1473
        %v1738 = vpack.c.b16 %v1476, %v1475
        %v1739 = vpack.c.b16 %v1478, %v1477
        %v1740 = vpack.c.b16 %v1480, %v1479
        %v1741 = vpack.c.b16 %v1482, %v1481
        %v1742 = vpack.c.b16 %v1484, %v1483
        %v1743 = vpack.c.b16 %v1486, %v1485
        %v1744 = vpack.c.b16 %v1488, %v1487
        %v1745 = vpack.c.b16 %v1490, %v1489
        %v1746 = vpack.c.b16 %v1492, %v1491
        %v1747 = vpack.c.b16 %v1494, %v1493
        %v1748 = vpack.c.b16 %v1496, %v1495
        %v1749 = vpack.c.b16 %v1498, %v1497
        %v1750 = vpack.c.b16 %v1500, %v1499
        %v1751 = vpack.c.b16 %v1502, %v1501
        %v1752 = vpack.c.b16 %v1504, %v1503
        %v1753 = vpack.c.b16 %v1506, %v1505
        %v1754 = vpack.c.b16 %v1508, %v1507
        %v1755 = vpack.c.b16 %v1510, %v1509
        %v1756 = vpack.c.b16 %v1512, %v1511
        %v1757 = vpack.c.b16 %v1514, %v1513
        %v1758 = vpack.c.b16 %v1516, %v1515
        %v1759 = vpack.c.b16 %v1518, %v1517
        %v1760 = vpack.c.b16 %v1520, %v1519
        %v1761 = vpack.c.b16 %v1522, %v1521
        %v1762 = vpack.c.b16 %v1524, %v1523
        %v1763 = vpack.c.b16 %v1526, %v1525
        %v1764 = vpack.c.b16 %v1528, %v1527
        %v1765 = vpack.c.b16 %v1530, %v1529
        %v1766 = vpack.c.b16 %v1532, %v1531
        %v1767 = vpack.c.b16 %v1534, %v1533
        %v1768 = vpack.c.b16 %v1536, %v1535
        %v1769 = vpack.c.b16 %v1538, %v1537
        %v1770 = vpack.c.b16 %v1540, %v1539
        %v1771 = vpack.c.b16 %v1542, %v1541
        %v1772 = vpack.c.b16 %v1544, %v1543
        %v1773 = vpack.c.b16 %v1546, %v1545
        %v1774 = vpack.c.b16 %v1548, %v1547
        %v1775 = vpack.c.b16 %v1550, %v1549
        %v1776 = vpack.c.b16 %v1552, %v1551
        %2001 = vmatpush.bf16.xpose.msra.mxu0 %v1560
        %2002 = vmatpush.bf16.xpose.msra.mxu0 %v1559
        %2003 = vmatpush.bf16.xpose.msra.mxu0 %v1558
        %2004 = vmatpush.bf16.xpose.msra.mxu0 %v1557
        %2005 = vmatpush.bf16.xpose.msra.mxu0 %v1556
        %2006 = vmatpush.bf16.xpose.msra.mxu0 %v1555
        %2007 = vmatpush.bf16.xpose.msra.mxu0 %v1554
        %2008 = vmatpush.bf16.xpose.msra.mxu0 %v1553
        %2009 = vmatmul.bf16.gmra.mxu0 %v208
        %v2010 = vpop.f32.mrf.mxu0
        %v2011 = vadd.f32 0.0, %v2010
        %v2012 = vpop.f32.mrf.mxu0
        %2013 = vdwg.mxu0
        %2014 = vmatpush.bf16.xpose.msra.mxu0 %v1568
        %2015 = vmatpush.bf16.xpose.msra.mxu0 %v1567
        %2016 = vmatpush.bf16.xpose.msra.mxu0 %v1566
        %2017 = vmatpush.bf16.xpose.msra.mxu0 %v1565
        %2018 = vmatpush.bf16.xpose.msra.mxu0 %v1564
        %2019 = vmatpush.bf16.xpose.msra.mxu0 %v1563
        %2020 = vmatpush.bf16.xpose.msra.mxu0 %v1562
        %2021 = vmatpush.bf16.xpose.msra.mxu0 %v1561
        %2022 = vmatmul.bf16.gmra.mxu0 %v208
        %v2023 = vpop.f32.mrf.mxu0
        %v2024 = vadd.f32 0.0, %v2023
        %v2025 = vpop.f32.mrf.mxu0
        %2026 = vdwg.mxu0
        %2027 = vmatpush.bf16.xpose.msra.mxu0 %v1576
        %2028 = vmatpush.bf16.xpose.msra.mxu0 %v1575
        %2029 = vmatpush.bf16.xpose.msra.mxu0 %v1574
        %2030 = vmatpush.bf16.xpose.msra.mxu0 %v1573
        %2031 = vmatpush.bf16.xpose.msra.mxu0 %v1572
        %2032 = vmatpush.bf16.xpose.msra.mxu0 %v1571
        %2033 = vmatpush.bf16.xpose.msra.mxu0 %v1570
        %2034 = vmatpush.bf16.xpose.msra.mxu0 %v1569
        %2035 = vmatmul.bf16.gmra.mxu0 %v208
        %v2036 = vpop.f32.mrf.mxu0
        %v2037 = vadd.f32 0.0, %v2036
        %v2038 = vpop.f32.mrf.mxu0
        %2039 = vdwg.mxu0
        %2040 = vmatpush.bf16.xpose.msra.mxu0 %v1584
        %2041 = vmatpush.bf16.xpose.msra.mxu0 %v1583
        %2042 = vmatpush.bf16.xpose.msra.mxu0 %v1582
        %2043 = vmatpush.bf16.xpose.msra.mxu0 %v1581
        %2044 = vmatpush.bf16.xpose.msra.mxu0 %v1580
        %2045 = vmatpush.bf16.xpose.msra.mxu0 %v1579
        %2046 = vmatpush.bf16.xpose.msra.mxu0 %v1578
        %2047 = vmatpush.bf16.xpose.msra.mxu0 %v1577
        %2048 = vmatmul.bf16.gmra.mxu0 %v208
        %v2049 = vpop.f32.mrf.mxu0
        %v2050 = vadd.f32 0.0, %v2049
        %v2051 = vpop.f32.mrf.mxu0
        %2052 = vdwg.mxu0
        %2053 = vmatpush.bf16.xpose.msra.mxu0 %v1592
        %2054 = vmatpush.bf16.xpose.msra.mxu0 %v1591
        %2055 = vmatpush.bf16.xpose.msra.mxu0 %v1590
        %2056 = vmatpush.bf16.xpose.msra.mxu0 %v1589
        %2057 = vmatpush.bf16.xpose.msra.mxu0 %v1588
        %2058 = vmatpush.bf16.xpose.msra.mxu0 %v1587
        %2059 = vmatpush.bf16.xpose.msra.mxu0 %v1586
        %2060 = vmatpush.bf16.xpose.msra.mxu0 %v1585
        %2061 = vmatmul.bf16.gmra.mxu0 %v208
        %v2062 = vpop.f32.mrf.mxu0
        %v2063 = vadd.f32 0.0, %v2062
        %v2064 = vpop.f32.mrf.mxu0
        %2065 = vdwg.mxu0
        %2066 = vmatpush.bf16.xpose.msra.mxu0 %v1600
        %2067 = vmatpush.bf16.xpose.msra.mxu0 %v1599
        %2068 = vmatpush.bf16.xpose.msra.mxu0 %v1598
        %2069 = vmatpush.bf16.xpose.msra.mxu0 %v1597
        %2070 = vmatpush.bf16.xpose.msra.mxu0 %v1596
        %2071 = vmatpush.bf16.xpose.msra.mxu0 %v1595
        %2072 = vmatpush.bf16.xpose.msra.mxu0 %v1594
        %2073 = vmatpush.bf16.xpose.msra.mxu0 %v1593
        %2074 = vmatmul.bf16.gmra.mxu0 %v208
        %v2075 = vpop.f32.mrf.mxu0
        %v2076 = vadd.f32 0.0, %v2075
        %v2077 = vpop.f32.mrf.mxu0
        %2078 = vdwg.mxu0
        %2079 = vmatpush.bf16.xpose.msra.mxu0 %v1608
        %2080 = vmatpush.bf16.xpose.msra.mxu0 %v1607
        %2081 = vmatpush.bf16.xpose.msra.mxu0 %v1606
        %2082 = vmatpush.bf16.xpose.msra.mxu0 %v1605
        %2083 = vmatpush.bf16.xpose.msra.mxu0 %v1604
        %2084 = vmatpush.bf16.xpose.msra.mxu0 %v1603
        %2085 = vmatpush.bf16.xpose.msra.mxu0 %v1602
        %2086 = vmatpush.bf16.xpose.msra.mxu0 %v1601
        %2087 = vmatmul.bf16.gmra.mxu0 %v208
        %v2088 = vpop.f32.mrf.mxu0
        %v2089 = vadd.f32 0.0, %v2088
        %v2090 = vpop.f32.mrf.mxu0
        %2091 = vdwg.mxu0
        %2092 = vmatpush.bf16.xpose.msra.mxu0 %v1616
        %2093 = vmatpush.bf16.xpose.msra.mxu0 %v1615
        %2094 = vmatpush.bf16.xpose.msra.mxu0 %v1614
        %2095 = vmatpush.bf16.xpose.msra.mxu0 %v1613
        %2096 = vmatpush.bf16.xpose.msra.mxu0 %v1612
        %2097 = vmatpush.bf16.xpose.msra.mxu0 %v1611
        %2098 = vmatpush.bf16.xpose.msra.mxu0 %v1610
        %2099 = vmatpush.bf16.xpose.msra.mxu0 %v1609
        %2100 = vmatmul.bf16.gmra.mxu0 %v208
        %v2101 = vpop.f32.mrf.mxu0
        %v2102 = vadd.f32 0.0, %v2101
        %v2103 = vpop.f32.mrf.mxu0
        %2104 = vdwg.mxu0
        %2105 = vmatpush.bf16.xpose.msra.mxu0 %v1624
        %2106 = vmatpush.bf16.xpose.msra.mxu0 %v1623
        %2107 = vmatpush.bf16.xpose.msra.mxu0 %v1622
        %2108 = vmatpush.bf16.xpose.msra.mxu0 %v1621
        %2109 = vmatpush.bf16.xpose.msra.mxu0 %v1620
        %2110 = vmatpush.bf16.xpose.msra.mxu0 %v1619
        %2111 = vmatpush.bf16.xpose.msra.mxu0 %v1618
        %2112 = vmatpush.bf16.xpose.msra.mxu0 %v1617
        %2113 = vmatmul.bf16.gmra.mxu0 %v208
        %v2114 = vpop.f32.mrf.mxu0
        %v2115 = vadd.f32 0.0, %v2114
        %v2116 = vpop.f32.mrf.mxu0
        %2117 = vdwg.mxu0
        %2118 = vmatpush.bf16.xpose.msra.mxu0 %v1632
        %2119 = vmatpush.bf16.xpose.msra.mxu0 %v1631
        %2120 = vmatpush.bf16.xpose.msra.mxu0 %v1630
        %2121 = vmatpush.bf16.xpose.msra.mxu0 %v1629
        %2122 = vmatpush.bf16.xpose.msra.mxu0 %v1628
        %2123 = vmatpush.bf16.xpose.msra.mxu0 %v1627
        %2124 = vmatpush.bf16.xpose.msra.mxu0 %v1626
        %2125 = vmatpush.bf16.xpose.msra.mxu0 %v1625
        %2126 = vmatmul.bf16.gmra.mxu0 %v208
        %v2127 = vpop.f32.mrf.mxu0
        %v2128 = vadd.f32 0.0, %v2127
        %v2129 = vpop.f32.mrf.mxu0
        %2130 = vdwg.mxu0
        %2131 = vmatpush.bf16.xpose.msra.mxu0 %v1640
        %2132 = vmatpush.bf16.xpose.msra.mxu0 %v1639
        %2133 = vmatpush.bf16.xpose.msra.mxu0 %v1638
        %2134 = vmatpush.bf16.xpose.msra.mxu0 %v1637
        %2135 = vmatpush.bf16.xpose.msra.mxu0 %v1636
        %2136 = vmatpush.bf16.xpose.msra.mxu0 %v1635
        %2137 = vmatpush.bf16.xpose.msra.mxu0 %v1634
        %2138 = vmatpush.bf16.xpose.msra.mxu0 %v1633
        %2139 = vmatmul.bf16.gmra.mxu0 %v208
        %v2140 = vpop.f32.mrf.mxu0
        %v2141 = vadd.f32 0.0, %v2140
        %v2142 = vpop.f32.mrf.mxu0
        %2143 = vdwg.mxu0
        %2144 = vmatpush.bf16.xpose.msra.mxu0 %v1648
        %2145 = vmatpush.bf16.xpose.msra.mxu0 %v1647
        %2146 = vmatpush.bf16.xpose.msra.mxu0 %v1646
        %2147 = vmatpush.bf16.xpose.msra.mxu0 %v1645
        %2148 = vmatpush.bf16.xpose.msra.mxu0 %v1644
        %2149 = vmatpush.bf16.xpose.msra.mxu0 %v1643
        %2150 = vmatpush.bf16.xpose.msra.mxu0 %v1642
        %2151 = vmatpush.bf16.xpose.msra.mxu0 %v1641
        %2152 = vmatmul.bf16.gmra.mxu0 %v208
        %v2153 = vpop.f32.mrf.mxu0
        %v2154 = vadd.f32 0.0, %v2153
        %v2155 = vpop.f32.mrf.mxu0
        %2156 = vdwg.mxu0
        %2157 = vmatpush.bf16.xpose.msra.mxu0 %v1656
        %2158 = vmatpush.bf16.xpose.msra.mxu0 %v1655
        %2159 = vmatpush.bf16.xpose.msra.mxu0 %v1654
        %2160 = vmatpush.bf16.xpose.msra.mxu0 %v1653
        %2161 = vmatpush.bf16.xpose.msra.mxu0 %v1652
        %2162 = vmatpush.bf16.xpose.msra.mxu0 %v1651
        %2163 = vmatpush.bf16.xpose.msra.mxu0 %v1650
        %2164 = vmatpush.bf16.xpose.msra.mxu0 %v1649
        %2165 = vmatmul.bf16.gmra.mxu0 %v208
        %v2166 = vpop.f32.mrf.mxu0
        %v2167 = vadd.f32 0.0, %v2166
        %v2168 = vpop.f32.mrf.mxu0
        %2169 = vdwg.mxu0
        %2170 = vmatpush.bf16.xpose.msra.mxu0 %v1664
        %2171 = vmatpush.bf16.xpose.msra.mxu0 %v1663
        %2172 = vmatpush.bf16.xpose.msra.mxu0 %v1662
        %2173 = vmatpush.bf16.xpose.msra.mxu0 %v1661
        %2174 = vmatpush.bf16.xpose.msra.mxu0 %v1660
        %2175 = vmatpush.bf16.xpose.msra.mxu0 %v1659
        %2176 = vmatpush.bf16.xpose.msra.mxu0 %v1658
        %2177 = vmatpush.bf16.xpose.msra.mxu0 %v1657
        %2178 = vmatmul.bf16.gmra.mxu0 %v208
        %v2179 = vpop.f32.mrf.mxu0
        %v2180 = vadd.f32 0.0, %v2179
        %v2181 = vpop.f32.mrf.mxu0
        %2182 = vdwg.mxu0
        %2183 = vmatpush.bf16.xpose.msra.mxu0 %v1672
        %2184 = vmatpush.bf16.xpose.msra.mxu0 %v1671
        %2185 = vmatpush.bf16.xpose.msra.mxu0 %v1670
        %2186 = vmatpush.bf16.xpose.msra.mxu0 %v1669
        %2187 = vmatpush.bf16.xpose.msra.mxu0 %v1668
        %2188 = vmatpush.bf16.xpose.msra.mxu0 %v1667
        %2189 = vmatpush.bf16.xpose.msra.mxu0 %v1666
        %2190 = vmatpush.bf16.xpose.msra.mxu0 %v1665
        %2191 = vmatmul.bf16.gmra.mxu0 %v208
        %v2192 = vpop.f32.mrf.mxu0
        %v2193 = vadd.f32 0.0, %v2192
        %v2194 = vpop.f32.mrf.mxu0
        %2195 = vdwg.mxu0
        %2196 = vmatpush.bf16.xpose.msra.mxu0 %v1680
        %2197 = vmatpush.bf16.xpose.msra.mxu0 %v1679
        %2198 = vmatpush.bf16.xpose.msra.mxu0 %v1678
        %2199 = vmatpush.bf16.xpose.msra.mxu0 %v1677
        %2200 = vmatpush.bf16.xpose.msra.mxu0 %v1676
        %2201 = vmatpush.bf16.xpose.msra.mxu0 %v1675
        %2202 = vmatpush.bf16.xpose.msra.mxu0 %v1674
        %2203 = vmatpush.bf16.xpose.msra.mxu0 %v1673
        %2204 = vmatmul.bf16.gmra.mxu0 %v208
        %v2205 = vpop.f32.mrf.mxu0
        %v2206 = vadd.f32 0.0, %v2205
        %v2207 = vpop.f32.mrf.mxu0
        %2208 = vdwg.mxu0
        %2209 = vmatpush.bf16.xpose.msra.mxu0 %v1688
        %2210 = vmatpush.bf16.xpose.msra.mxu0 %v1687
        %2211 = vmatpush.bf16.xpose.msra.mxu0 %v1686
        %2212 = vmatpush.bf16.xpose.msra.mxu0 %v1685
        %2213 = vmatpush.bf16.xpose.msra.mxu0 %v1684
        %2214 = vmatpush.bf16.xpose.msra.mxu0 %v1683
        %2215 = vmatpush.bf16.xpose.msra.mxu0 %v1682
        %2216 = vmatpush.bf16.xpose.msra.mxu0 %v1681
        %2217 = vmatmul.bf16.gmra.mxu0 %v208
        %v2218 = vpop.f32.mrf.mxu0
        %v2219 = vadd.f32 0.0, %v2218
        %v2220 = vpop.f32.mrf.mxu0
        %2221 = vdwg.mxu0
        %2222 = vmatpush.bf16.xpose.msra.mxu0 %v1696
        %2223 = vmatpush.bf16.xpose.msra.mxu0 %v1695
        %2224 = vmatpush.bf16.xpose.msra.mxu0 %v1694
        %2225 = vmatpush.bf16.xpose.msra.mxu0 %v1693
        %2226 = vmatpush.bf16.xpose.msra.mxu0 %v1692
        %2227 = vmatpush.bf16.xpose.msra.mxu0 %v1691
        %2228 = vmatpush.bf16.xpose.msra.mxu0 %v1690
        %2229 = vmatpush.bf16.xpose.msra.mxu0 %v1689
        %2230 = vmatmul.bf16.gmra.mxu0 %v208
        %v2231 = vpop.f32.mrf.mxu0
        %v2232 = vadd.f32 0.0, %v2231
        %v2233 = vpop.f32.mrf.mxu0
        %2234 = vdwg.mxu0
        %2235 = vmatpush.bf16.xpose.msra.mxu0 %v1704
        %2236 = vmatpush.bf16.xpose.msra.mxu0 %v1703
        %2237 = vmatpush.bf16.xpose.msra.mxu0 %v1702
        %2238 = vmatpush.bf16.xpose.msra.mxu0 %v1701
        %2239 = vmatpush.bf16.xpose.msra.mxu0 %v1700
        %2240 = vmatpush.bf16.xpose.msra.mxu0 %v1699
        %2241 = vmatpush.bf16.xpose.msra.mxu0 %v1698
        %2242 = vmatpush.bf16.xpose.msra.mxu0 %v1697
        %2243 = vmatmul.bf16.gmra.mxu0 %v208
        %v2244 = vpop.f32.mrf.mxu0
        %v2245 = vadd.f32 0.0, %v2244
        %v2246 = vpop.f32.mrf.mxu0
        %2247 = vdwg.mxu0
        %2248 = vmatpush.bf16.xpose.msra.mxu0 %v1712
        %2249 = vmatpush.bf16.xpose.msra.mxu0 %v1711
        %2250 = vmatpush.bf16.xpose.msra.mxu0 %v1710
        %2251 = vmatpush.bf16.xpose.msra.mxu0 %v1709
        %2252 = vmatpush.bf16.xpose.msra.mxu0 %v1708
        %2253 = vmatpush.bf16.xpose.msra.mxu0 %v1707
        %2254 = vmatpush.bf16.xpose.msra.mxu0 %v1706
        %2255 = vmatpush.bf16.xpose.msra.mxu0 %v1705
        %2256 = vmatmul.bf16.gmra.mxu0 %v208
        %v2257 = vpop.f32.mrf.mxu0
        %v2258 = vadd.f32 0.0, %v2257
        %v2259 = vpop.f32.mrf.mxu0
        %2260 = vdwg.mxu0
        %2261 = vmatpush.bf16.xpose.msra.mxu0 %v1720
        %2262 = vmatpush.bf16.xpose.msra.mxu0 %v1719
        %2263 = vmatpush.bf16.xpose.msra.mxu0 %v1718
        %2264 = vmatpush.bf16.xpose.msra.mxu0 %v1717
        %2265 = vmatpush.bf16.xpose.msra.mxu0 %v1716
        %2266 = vmatpush.bf16.xpose.msra.mxu0 %v1715
        %2267 = vmatpush.bf16.xpose.msra.mxu0 %v1714
        %2268 = vmatpush.bf16.xpose.msra.mxu0 %v1713
        %2269 = vmatmul.bf16.gmra.mxu0 %v208
        %v2270 = vpop.f32.mrf.mxu0
        %v2271 = vadd.f32 0.0, %v2270
        %v2272 = vpop.f32.mrf.mxu0
        %2273 = vdwg.mxu0
        %2274 = vmatpush.bf16.xpose.msra.mxu0 %v1728
        %2275 = vmatpush.bf16.xpose.msra.mxu0 %v1727
        %2276 = vmatpush.bf16.xpose.msra.mxu0 %v1726
        %2277 = vmatpush.bf16.xpose.msra.mxu0 %v1725
        %2278 = vmatpush.bf16.xpose.msra.mxu0 %v1724
        %2279 = vmatpush.bf16.xpose.msra.mxu0 %v1723
        %2280 = vmatpush.bf16.xpose.msra.mxu0 %v1722
        %2281 = vmatpush.bf16.xpose.msra.mxu0 %v1721
        %2282 = vmatmul.bf16.gmra.mxu0 %v208
        %v2283 = vpop.f32.mrf.mxu0
        %v2284 = vadd.f32 0.0, %v2283
        %v2285 = vpop.f32.mrf.mxu0
        %2286 = vdwg.mxu0
        %2287 = vmatpush.bf16.xpose.msra.mxu0 %v1736
        %2288 = vmatpush.bf16.xpose.msra.mxu0 %v1735
        %2289 = vmatpush.bf16.xpose.msra.mxu0 %v1734
        %2290 = vmatpush.bf16.xpose.msra.mxu0 %v1733
        %2291 = vmatpush.bf16.xpose.msra.mxu0 %v1732
        %2292 = vmatpush.bf16.xpose.msra.mxu0 %v1731
        %2293 = vmatpush.bf16.xpose.msra.mxu0 %v1730
        %2294 = vmatpush.bf16.xpose.msra.mxu0 %v1729
        %2295 = vmatmul.bf16.gmra.mxu0 %v208
        %v2296 = vpop.f32.mrf.mxu0
        %v2297 = vadd.f32 0.0, %v2296
        %v2298 = vpop.f32.mrf.mxu0
        %2299 = vdwg.mxu0
        %2300 = vmatpush.bf16.xpose.msra.mxu0 %v1744
        %2301 = vmatpush.bf16.xpose.msra.mxu0 %v1743
        %2302 = vmatpush.bf16.xpose.msra.mxu0 %v1742
        %2303 = vmatpush.bf16.xpose.msra.mxu0 %v1741
        %2304 = vmatpush.bf16.xpose.msra.mxu0 %v1740
        %2305 = vmatpush.bf16.xpose.msra.mxu0 %v1739
        %2306 = vmatpush.bf16.xpose.msra.mxu0 %v1738
        %2307 = vmatpush.bf16.xpose.msra.mxu0 %v1737
        %2308 = vmatmul.bf16.gmra.mxu0 %v208
        %v2309 = vpop.f32.mrf.mxu0
        %v2310 = vadd.f32 0.0, %v2309
        %v2311 = vpop.f32.mrf.mxu0
        %2312 = vdwg.mxu0
        %2313 = vmatpush.bf16.xpose.msra.mxu0 %v1752
        %2314 = vmatpush.bf16.xpose.msra.mxu0 %v1751
        %2315 = vmatpush.bf16.xpose.msra.mxu0 %v1750
        %2316 = vmatpush.bf16.xpose.msra.mxu0 %v1749
        %2317 = vmatpush.bf16.xpose.msra.mxu0 %v1748
        %2318 = vmatpush.bf16.xpose.msra.mxu0 %v1747
        %2319 = vmatpush.bf16.xpose.msra.mxu0 %v1746
        %2320 = vmatpush.bf16.xpose.msra.mxu0 %v1745
        %2321 = vmatmul.bf16.gmra.mxu0 %v208
        %v2322 = vpop.f32.mrf.mxu0
        %v2323 = vadd.f32 0.0, %v2322
        %v2324 = vpop.f32.mrf.mxu0
        %2325 = vdwg.mxu0
        %2326 = vmatpush.bf16.xpose.msra.mxu0 %v1760
        %2327 = vmatpush.bf16.xpose.msra.mxu0 %v1759
        %2328 = vmatpush.bf16.xpose.msra.mxu0 %v1758
        %2329 = vmatpush.bf16.xpose.msra.mxu0 %v1757
        %2330 = vmatpush.bf16.xpose.msra.mxu0 %v1756
        %2331 = vmatpush.bf16.xpose.msra.mxu0 %v1755
        %2332 = vmatpush.bf16.xpose.msra.mxu0 %v1754
        %2333 = vmatpush.bf16.xpose.msra.mxu0 %v1753
        %2334 = vmatmul.bf16.gmra.mxu0 %v208
        %v2335 = vpop.f32.mrf.mxu0
        %v2336 = vadd.f32 0.0, %v2335
        %v2337 = vpop.f32.mrf.mxu0
        %2338 = vdwg.mxu0
        %2339 = vmatpush.bf16.xpose.msra.mxu0 %v1768
        %2340 = vmatpush.bf16.xpose.msra.mxu0 %v1767
        %2341 = vmatpush.bf16.xpose.msra.mxu0 %v1766
        %2342 = vmatpush.bf16.xpose.msra.mxu0 %v1765
        %2343 = vmatpush.bf16.xpose.msra.mxu0 %v1764
        %2344 = vmatpush.bf16.xpose.msra.mxu0 %v1763
        %2345 = vmatpush.bf16.xpose.msra.mxu0 %v1762
        %2346 = vmatpush.bf16.xpose.msra.mxu0 %v1761
        %2347 = vmatmul.bf16.gmra.mxu0 %v208
        %v2348 = vpop.f32.mrf.mxu0
        %v2349 = vadd.f32 0.0, %v2348
        %v2350 = vpop.f32.mrf.mxu0
        %2351 = vdwg.mxu0
        %2352 = vmatpush.bf16.xpose.msra.mxu0 %v1776
        %2353 = vmatpush.bf16.xpose.msra.mxu0 %v1775
        %2354 = vmatpush.bf16.xpose.msra.mxu0 %v1774
        %2355 = vmatpush.bf16.xpose.msra.mxu0 %v1773
        %2356 = vmatpush.bf16.xpose.msra.mxu0 %v1772
        %2357 = vmatpush.bf16.xpose.msra.mxu0 %v1771
        %2358 = vmatpush.bf16.xpose.msra.mxu0 %v1770
        %2359 = vmatpush.bf16.xpose.msra.mxu0 %v1769
        %2360 = vmatmul.bf16.gmra.mxu0 %v208
        %v2361 = vpop.f32.mrf.mxu0
        %v2362 = vadd.f32 0.0, %v2361
        %v2363 = vpop.f32.mrf.mxu0
        %2364 = vdwg.mxu0
        %v2365 = vld [vmem:[%s2] sm:$0xff]
        %2367 = vset.pattern.permute.xlu0 0
        %2368 = vperm.xlu0 %2367, %v2365
        %v2369 = vpop.permute.xlu0 %2368
        %v2371 = vmul.f32 %v2011, %v2369
        %v2372 = vmul.f32 %v2024, %v2369
        %v2373 = vmul.f32 %v2037, %v2369
        %v2374 = vmul.f32 %v2050, %v2369
        %v2375 = vmul.f32 %v2063, %v2369
        %v2376 = vmul.f32 %v2076, %v2369
        %v2377 = vmul.f32 %v2089, %v2369
        %v2378 = vmul.f32 %v2102, %v2369
        %v2379 = vmul.f32 %v2115, %v2369
        %v2380 = vmul.f32 %v2128, %v2369
        %v2381 = vmul.f32 %v2141, %v2369
        %v2382 = vmul.f32 %v2154, %v2369
        %v2383 = vmul.f32 %v2167, %v2369
        %v2384 = vmul.f32 %v2180, %v2369
        %v2385 = vmul.f32 %v2193, %v2369
        %v2386 = vmul.f32 %v2206, %v2369
        %v2387 = vmul.f32 %v2219, %v2369
        %v2388 = vmul.f32 %v2232, %v2369
        %v2389 = vmul.f32 %v2245, %v2369
        %v2390 = vmul.f32 %v2258, %v2369
        %v2391 = vmul.f32 %v2271, %v2369
        %v2392 = vmul.f32 %v2284, %v2369
        %v2393 = vmul.f32 %v2297, %v2369
        %v2394 = vmul.f32 %v2310, %v2369
        %v2395 = vmul.f32 %v2323, %v2369
        %v2396 = vmul.f32 %v2336, %v2369
        %v2397 = vmul.f32 %v2349, %v2369
        %v2398 = vmul.f32 %v2362, %v2369
        %2399 = vset.pattern.permute.xlu0 1
        %2400 = vperm.xlu0 %2399, %v2365
        %v2401 = vpop.permute.xlu0 %2400
        %v2403 = vadd.f32 %v2371, %v2401
        %v2404 = vadd.f32 %v2372, %v2401
        %v2405 = vadd.f32 %v2373, %v2401
        %v2406 = vadd.f32 %v2374, %v2401
        %v2407 = vadd.f32 %v2375, %v2401
        %v2408 = vadd.f32 %v2376, %v2401
        %v2409 = vadd.f32 %v2377, %v2401
        %v2410 = vadd.f32 %v2378, %v2401
        %v2411 = vadd.f32 %v2379, %v2401
        %v2412 = vadd.f32 %v2380, %v2401
        %v2413 = vadd.f32 %v2381, %v2401
        %v2414 = vadd.f32 %v2382, %v2401
        %v2415 = vadd.f32 %v2383, %v2401
        %v2416 = vadd.f32 %v2384, %v2401
        %v2417 = vadd.f32 %v2385, %v2401
        %v2418 = vadd.f32 %v2386, %v2401
        %v2419 = vadd.f32 %v2387, %v2401
        %v2420 = vadd.f32 %v2388, %v2401
        %v2421 = vadd.f32 %v2389, %v2401
        %v2422 = vadd.f32 %v2390, %v2401
        %v2423 = vadd.f32 %v2391, %v2401
        %v2424 = vadd.f32 %v2392, %v2401
        %v2425 = vadd.f32 %v2393, %v2401
        %v2426 = vadd.f32 %v2394, %v2401
        %v2427 = vadd.f32 %v2395, %v2401
        %v2428 = vadd.f32 %v2396, %v2401
        %v2429 = vadd.f32 %v2397, %v2401
        %v2430 = vadd.f32 %v2398, %v2401
        %v2431 = vmax.f32 %v2403, 0.0
        %v2432 = vmax.f32 %v2404, 0.0
        %v2433 = vmax.f32 %v2405, 0.0
        %v2434 = vmax.f32 %v2406, 0.0
        %v2435 = vmax.f32 %v2407, 0.0
        %v2436 = vmax.f32 %v2408, 0.0
        %v2437 = vmax.f32 %v2409, 0.0
        %v2438 = vmax.f32 %v2410, 0.0
        %v2439 = vmax.f32 %v2411, 0.0
        %v2440 = vmax.f32 %v2412, 0.0
        %v2441 = vmax.f32 %v2413, 0.0
        %v2442 = vmax.f32 %v2414, 0.0
        %v2443 = vmax.f32 %v2415, 0.0
        %v2444 = vmax.f32 %v2416, 0.0
        %v2445 = vmax.f32 %v2417, 0.0
        %v2446 = vmax.f32 %v2418, 0.0
        %v2447 = vmax.f32 %v2419, 0.0
        %v2448 = vmax.f32 %v2420, 0.0
        %v2449 = vmax.f32 %v2421, 0.0
        %v2450 = vmax.f32 %v2422, 0.0
        %v2451 = vmax.f32 %v2423, 0.0
        %v2452 = vmax.f32 %v2424, 0.0
        %v2453 = vmax.f32 %v2425, 0.0
        %v2454 = vmax.f32 %v2426, 0.0
        %v2455 = vmax.f32 %v2427, 0.0
        %v2456 = vmax.f32 %v2428, 0.0
        %v2457 = vmax.f32 %v2429, 0.0
        %v2458 = vmax.f32 %v2430, 0.0
        %2459 = vst [vmem:[%s205] sm:$0xff] %v2431
        %2460 = vst [vmem:[%s205 + $0x8] sm:$0xff] %v2432
        %2461 = vst [vmem:[%s205 + $0x10] sm:$0xff] %v2433
        %2462 = vst [vmem:[%s205 + $0x18] sm:$0xff] %v2434
        %2463 = vst [vmem:[%s205 + $0x20] sm:$0xff] %v2435
        %2464 = vst [vmem:[%s205 + $0x28] sm:$0xff] %v2436
        %2465 = vst [vmem:[%s205 + $0x30] sm:$0xff] %v2437
        %2466 = vst [vmem:[%s205 + $0x38] sm:$0xff] %v2438
        %2467 = vst [vmem:[%s205 + $0x40] sm:$0xff] %v2439
        %2468 = vst [vmem:[%s205 + $0x48] sm:$0xff] %v2440
        %2469 = vst [vmem:[%s205 + $0x50] sm:$0xff] %v2441
        %2470 = vst [vmem:[%s205 + $0x58] sm:$0xff] %v2442
        %2471 = vst [vmem:[%s205 + $0x60] sm:$0xff] %v2443
        %2472 = vst [vmem:[%s205 + $0x68] sm:$0xff] %v2444
        %2473 = vst [vmem:[%s205 + $0x70] sm:$0xff] %v2445
        %2474 = vst [vmem:[%s205 + $0x78] sm:$0xff] %v2446
        %2475 = vst [vmem:[%s205 + $0x80] sm:$0xff] %v2447
        %2476 = vst [vmem:[%s205 + $0x88] sm:$0xff] %v2448
        %2477 = vst [vmem:[%s205 + $0x90] sm:$0xff] %v2449
        %2478 = vst [vmem:[%s205 + $0x98] sm:$0xff] %v2450
        %2479 = vst [vmem:[%s205 + $0xa0] sm:$0xff] %v2451
        %2480 = vst [vmem:[%s205 + $0xa8] sm:$0xff] %v2452
        %2481 = vst [vmem:[%s205 + $0xb0] sm:$0xff] %v2453
        %2482 = vst [vmem:[%s205 + $0xb8] sm:$0xff] %v2454
        %2483 = vst [vmem:[%s205 + $0xc0] sm:$0xff] %v2455
        %2484 = vst [vmem:[%s205 + $0xc8] sm:$0xff] %v2456
        %2485 = vst [vmem:[%s205 + $0xd0] sm:$0xff] %v2457
        %2486 = vst [vmem:[%s205 + $0xd8] sm:$0xff] %v2458
        %s2487 = sand.u32 %s97, 1
        %s2488 = scalar_lea.sflag [#allocation4], %s2487
        %s2489 = sand.u32 %s97, 1
        %s2490 = smul.addr %s2489, 224
        %s2491 = scalar_lea.vmem [#allocation7], %s2490
        // Predicated region
        $region41: #{tpu_custom_call.1} parent=31 // pred_check
          %p2492 = pneg %p107
        $region42: #{tpu_custom_call.1} parent=31 // pred_check_branch
          %2494 = sbr.rel (%p2492) target = $region44
        $region43: #{tpu_custom_call.1} parent=31 // pred_region
          %s2495 = smul.u32 28, %s21
          %2497 = vsyncadd %s2488, 0
          %s2498 = smul.addr %s2495, 8
          %s2499 = scalar_lea.hbm %s3, %s2498
          %s2501 = sshll.u32 %s2491, 4
          %s2502 = int_to_ptr.vmem [resolvable:$true] %s2501
          %s2503 = sshll.u32 %s2499, 4
          %s2504 = int_to_ptr.hbm [resolvable:$true] %s2503
          %2506 = dma.vmem_to_hbm [thread:$0]  %s2502, 3584, %s2504, %s2488
        $region44: #{tpu_custom_call.1} parent=31 // pred_fallthru
          _
      $region32: #{tpu_custom_call.1} parent=5 // pred_fallthru
        _
      %p2507 = scmp.le.s32.totalorder 2, %s16
      // Predicated region
      $region45: #{tpu_custom_call.1} parent=5 // pred_check
        %p2508 = pneg %p2507
      $region46: #{tpu_custom_call.1} parent=5 // pred_check_branch
        %2510 = sbr.rel (%p2508) target = $region48
      $region47: #{tpu_custom_call.1} parent=5 // pred_region
        %s2511 = ssub.s32 %s16, 2
        // Predicated region
        $region49: #{tpu_custom_call.1} parent=47 // pred_check
          %p2512 = pneg %p113
        $region50: #{tpu_custom_call.1} parent=47 // pred_check_branch
          %2514 = sbr.rel (%p2512) target = $region52
        $region51: #{tpu_custom_call.1} parent=47 // pred_region
          %s2515 = sand.u32 %s98, 1
          %s2516 = scalar_lea.sflag [#allocation4], %s2515
          %s2517 = sand.u32 %s98, 1
          %s2518 = smul.addr %s2517, 224
          %s2519 = scalar_lea.vmem [#allocation7], %s2518
          %2521 = dma.done %s2516, 3584
        $region52: #{tpu_custom_call.1} parent=47 // pred_fallthru
          _
      $region48: #{tpu_custom_call.1} parent=5 // pred_fallthru
        _
    $region6: #{tpu_custom_call.1} parent=1 // loop_footer
      %s20 = sadd.s32 1, %s16
    $region7: #{tpu_custom_call.1} parent=1 // loop_footer_branch
      %15 = sbr.rel target = $region3
    $region8: #{tpu_custom_call.1} parent=1 // loop_exit
      _
    %2522 = vsyncpa [#allocation3], 1
    %s2523 = scalar_lea.sflag [#allocation3], 1
    %2524 = vsyncpa %s2523, 1
    %2525 = vsyncpa [#allocation6], 1
    %s2526 = scalar_lea.sflag [#allocation6], 1
    %2527 = vsyncpa %s2526, 1
    %2528 = vsyncpa [#allocation4], 1
    %s2529 = scalar_lea.sflag [#allocation4], 1
    %2530 = vsyncpa %s2529, 1

</llo_original>
